<compile_context>
chip_gen: v7x
topology: tpu7x:2x2x1
jax: 0.10.0
libtpu: 0.0.40
codegen_flags: <defaults>
</compile_context>

<pallas_src>
import jax
import jax.numpy as jnp
from jax.experimental import pallas as pl
from jax.experimental.pallas import tpu as pltpu

EMB = 32          # config.emb_dim
EDGE = 16         # config.edge_dim
STEPS = 2
NEG_SLOPE = 0.01  # torch.nn.LeakyReLU default
NEG_BIG = -1e30


def _leaky(v):
    return jnp.where(v >= 0, v, NEG_SLOPE * v)


# ---------------------------------------------------------------------------
# Fused Pallas kernel: both message-passing steps in one invocation.
# ---------------------------------------------------------------------------
def _fused_kernel(tgt_ref,                      # SMEM  [E]        int32
                  src_ref, bic_ref, bir_ref,    # VMEM  [E,1] [N,1] [1,N] int32
                  x_ref, ea_ref,                # VMEM  [N,EMB] [E,EDGE]
                  wmx_ref, wme_ref, bm_ref,     # [S,EMB,EMB] [S,EDGE,EMB] [S,1,EMB]
                  wax_ref, wag_ref, waa_ref, ba_ref,
                  wg_ref, bg_ref, wf_ref, bf_ref,
                  wta_ref, wtg_ref, bt_ref,
                  xo_ref, xgo_ref,              # outputs [N,EMB] [G,EMB]
                  m_scr):                       # scratch VMEM [E,EMB]
    n, d = x_ref.shape
    e = ea_ref.shape[0]
    g = xgo_ref.shape[0]
    steps = wmx_ref.shape[0]
    f32 = jnp.float32

    # Gather / membership masks built in-register from integer indices
    # (no dense one-hots DMA'd from HBM).
    src_oh = (jax.lax.broadcasted_iota(jnp.int32, (e, n), 1)
              == src_ref[...]).astype(f32)                       # [E, N]
    memb_gn = (jax.lax.broadcasted_iota(jnp.int32, (g, n), 0)
               == bir_ref[...])                                  # [G, N] bool
    memb_ng = (jax.lax.broadcasted_iota(jnp.int32, (n, g), 1)
               == bic_ref[...]).astype(f32)                      # [N, G]
    node_iota = jax.lax.broadcasted_iota(jnp.int32, (n, 1), 0)   # [N, 1]

    x = x_ref[...]
    ea = ea_ref[...]
    xg = jnp.zeros((g, d), f32)                                  # xg_init is None

    for s in range(steps):
        # ------------------ GraphNet (aggr='max') ------------------
        # m_e = leaky(x[src_e] @ Wm_x + ea_e @ Wm_e + bm)
        #     = leaky(src_oh @ (x @ Wm_x) + ea @ Wm_e + bm)   (project, then gather)
        xw = jnp.dot(x, wmx_ref[s], preferred_element_type=f32)          # [N, D]
        msg = jnp.dot(src_oh, xw, preferred_element_type=f32)            # [E, D]
        msg = msg + jnp.dot(ea, wme_ref[s], preferred_element_type=f32)
        msg = _leaky(msg + bm_ref[s])
        m_scr[...] = msg

        # segment-max over target nodes: running-max accumulator,
        # no [N, E, D] broadcast is ever materialized.
        def edge_body(ei, acc):
            t = tgt_ref[ei]                            # SMEM scalar read
            row = m_scr[pl.ds(ei, 1), :]               # [1, D]
            hit = node_iota == t                       # [N, 1]
            return jnp.maximum(acc, jnp.where(hit, row, NEG_BIG))

        agg = jax.lax.fori_loop(0, e, edge_body,
                                jnp.full((n, d), NEG_BIG, f32))
        agg = jnp.where(agg > 0.5 * NEG_BIG, agg, 0.0)  # no in-edges -> 0 (PyG 'max')

        # x = leaky(x@Wa_x + xg[batch]@Wa_g + agg@Wa_a + ba) + x
        xg_pro = jnp.dot(xg, wag_ref[s], preferred_element_type=f32)     # [G, D]
        upd = (jnp.dot(x, wax_ref[s], preferred_element_type=f32)
               + jnp.dot(memb_ng, xg_pro, preferred_element_type=f32)
               + jnp.dot(agg, waa_ref[s], preferred_element_type=f32))
        x = _leaky(upd + ba_ref[s]) + x

        # ------------------ GlobalNode (GlobalAttention) ------------------
        feat = _leaky(jnp.dot(x, wf_ref[s], preferred_element_type=f32)
                      + bf_ref[s])                                       # [N, D]
        # gate as a lane-dense row [1, N]:  wg[1,D] @ x^T  (B-transposed matmul)
        gate = jax.lax.dot_general(wg_ref[s], x, (((1,), (1,)), ((), ())),
                                   preferred_element_type=f32) + bg_ref[s]
        logits = jnp.where(memb_gn, gate, NEG_BIG)                       # [G, N]
        mx = jnp.max(logits, axis=-1, keepdims=True)                     # [G, 1]
        shifted = jnp.where(memb_gn, gate - mx, -100.0)  # where-first, exp-second
        ew = jnp.where(memb_gn, jnp.exp(shifted), 0.0)                   # [G, N]
        ssum = jnp.sum(ew, axis=-1, keepdims=True)                       # [G, 1]
        p = ew * pl.reciprocal(jnp.maximum(ssum, 1e-30), approx=True)    # empty-graph guard
        xg_att = jnp.dot(p, feat, preferred_element_type=f32)            # [G, D]

        # xg = leaky(xg_att@Wt_a + xg@Wt_g + bt) + xg
        tr = (jnp.dot(xg_att, wta_ref[s], preferred_element_type=f32)
              + jnp.dot(xg, wtg_ref[s], preferred_element_type=f32))
        xg = _leaky(tr + bt_ref[s]) + xg

    xo_ref[...] = x
    xgo_ref[...] = xg


# ---------------------------------------------------------------------------
# Wrapper: split + stack weights host-side, launch the single fused kernel.
# ---------------------------------------------------------------------------
def pallas_forward(params, x, edge_attr, src, tgt, batch_ind, num_graphs):
    n = x.shape[0]
    e = edge_attr.shape[0]
    g = int(num_graphs)

    def stack(key):
        return jnp.stack([p[key] for p in params]).astype(jnp.float32)

    w_mess, b_mess = stack("w_mess"), stack("b_mess")
    w_agg, b_agg = stack("w_agg"), stack("b_agg")
    w_gate, b_gate = stack("w_gate"), stack("b_gate")
    w_feat, b_feat = stack("w_feat"), stack("b_feat")
    w_tr, b_tr = stack("w_tr"), stack("b_tr")

    # Split the concatenated-input weight matrices so the kernel needs no concats.
    wm_x, wm_e = w_mess[:, :EMB, :], w_mess[:, EMB:, :]
    wa_x = w_agg[:, :EMB, :]
    wa_g = w_agg[:, EMB:2 * EMB, :]
    wa_a = w_agg[:, 2 * EMB:, :]
    wt_a, wt_g = w_tr[:, :EMB, :], w_tr[:, EMB:, :]
    wg_row = jnp.transpose(w_gate, (0, 2, 1))          # [STEPS, 1, EMB]

    src_col = src.astype(jnp.int32).reshape(e, 1)
    bi_col = batch_ind.astype(jnp.int32).reshape(n, 1)
    bi_row = batch_ind.astype(jnp.int32).reshape(1, n)
    tgt_i = tgt.astype(jnp.int32)

    smem = pl.BlockSpec(memory_space=pltpu.MemorySpace.SMEM)
    vmem = pl.BlockSpec(memory_space=pltpu.MemorySpace.VMEM)

    return pl.pallas_call(
        _fused_kernel,
        out_shape=(jax.ShapeDtypeStruct((n, EMB), jnp.float32),
                   jax.ShapeDtypeStruct((g, EMB), jnp.float32)),
        in_specs=[smem] + [vmem] * 19,
        out_specs=[vmem, vmem],
        scratch_shapes=[pltpu.VMEM((e, EMB), jnp.float32)],
    )(tgt_i, src_col, bi_col, bi_row, x, edge_attr,
      wm_x, wm_e, b_mess,
      wa_x, wa_g, wa_a, b_agg,
      wg_row, b_gate, w_feat, b_feat,
      wt_a, wt_g, b_tr)


# ---------------------------------------------------------------------------
# Pure-JAX reference (for correctness checking only)
# ---------------------------------------------------------------------------
def reference_forward(params, x, edge_attr, src, tgt, batch_ind, num_graphs):
    n = x.shape[0]
    xg = jnp.zeros((num_graphs, EMB), jnp.float32)
    for p in params:
        z = jnp.concatenate([x[src], edge_attr], axis=1)
        m = _leaky(z @ p["w_mess"] + p["b_mess"])
        agg = jax.ops.segment_max(m, tgt, num_segments=n)
        agg = jnp.where(jnp.isneginf(agg), 0.0, agg)
        u = jnp.concatenate([x, xg[batch_ind], agg], axis=1)
        x = _leaky(u @ p["w_agg"] + p["b_agg"]) + x

        gate = (x @ p["w_gate"] + p["b_gate"])[:, 0]
        feat = _leaky(x @ p["w_feat"] + p["b_feat"])
        gmax = jax.ops.segment_max(gate, batch_ind, num_segments=num_graphs)
        ew = jnp.exp(gate - gmax[batch_ind])
        s = jax.ops.segment_sum(ew, batch_ind, num_segments=num_graphs)
        a = ew / s[batch_ind]
        xg_att = jax.ops.segment_sum(a[:, None] * feat, batch_ind,
                                     num_segments=num_graphs)
        cat = jnp.concatenate([xg_att, xg], axis=1)
        xg = _leaky(cat @ p["w_tr"] + p["b_tr"]) + xg
    return x, xg


# ---------------------------------------------------------------------------
# Deterministic parameter init (PyTorch Linear-style uniform init)
# ---------------------------------------------------------------------------
def init_params(key):
    def lin(k1, k2, fan_in, fan_out):
        bound = 1.0 / (fan_in ** 0.5)
        w = jax.random.uniform(k1, (fan_in, fan_out), jnp.float32, -bound, bound)
        b = jax.random.uniform(k2, (1, fan_out), jnp.float32, -bound, bound)
        return w, b

    params = []
    for _ in range(STEPS):
        key, *ks = jax.random.split(key, 11)
        w_mess, b_mess = lin(ks[0], ks[1], EMB + EDGE, EMB)
        w_agg, b_agg = lin(ks[2], ks[3], 3 * EMB, EMB)
        w_gate, b_gate = lin(ks[4], ks[5], EMB, 1)
        w_feat, b_feat = lin(ks[6], ks[7], EMB, EMB)
        w_tr, b_tr = lin(ks[8], ks[9], 2 * EMB, EMB)
        params.append(dict(w_mess=w_mess, b_mess=b_mess,
                           w_agg=w_agg, b_agg=b_agg,
                           w_gate=w_gate, b_gate=b_gate,
                           w_feat=w_feat, b_feat=b_feat,
                           w_tr=w_tr, b_tr=b_tr))
    return params


if __name__ == "__main__":
    key = jax.random.PRNGKey(0)
    k_param, k_x, k_e = jax.random.split(key, 3)

    # Small deterministic graph: 2 graphs x 6 nodes, ring + skip edges.
    nodes_per, num_graphs = 6, 2
    N = nodes_per * num_graphs
    src_list, tgt_list = [], []
    for gi in range(num_graphs):
        base = gi * nodes_per
        for i in range(nodes_per):
            src_list += [base + i, base + i]
            tgt_list += [base + (i + 1) % nodes_per, base + (i + 2) % nodes_per]
    E = len(src_list)  # 24

    src = jnp.array(src_list, dtype=jnp.int32)
    tgt = jnp.array(tgt_list, dtype=jnp.int32)
    batch_ind = jnp.array([gi for gi in range(num_graphs) for _ in range(nodes_per)],
                          dtype=jnp.int32)

    x = jax.random.normal(k_x, (N, EMB), jnp.float32)
    edge_attr = jax.random.normal(k_e, (E, EDGE), jnp.float32)

    params = init_params(k_param)

    fwd = jax.jit(pallas_forward, static_argnames=("num_graphs",))
    x_out, xg_out = fwd(params, x, edge_attr, src, tgt, batch_ind,
                        num_graphs=num_graphs)
    jax.block_until_ready((x_out, xg_out))

    # Correctness check against a pure-JAX reference.
    x_ref, xg_ref = reference_forward(params, x, edge_attr, src, tgt,
                                      batch_ind, num_graphs)
    assert x_out.shape == (N, EMB) and xg_out.shape == (num_graphs, EMB)
    assert jnp.allclose(x_out, x_ref, rtol=2e-2, atol=2e-2)
    assert jnp.allclose(xg_out, xg_ref, rtol=2e-2, atol=2e-2)

    print("KERNEL_OK")
</pallas_src>

<mosaic_0001>
module attributes {stable_mosaic.version = 11 : i64} {
  func.func @_fused_kernel(%arg0: memref<24xi32, #tpu.memory_space<smem>>, %arg1: memref<24x1xi32, #tpu.memory_space<vmem>>, %arg2: memref<12x1xi32, #tpu.memory_space<vmem>>, %arg3: memref<1x12xi32, #tpu.memory_space<vmem>>, %arg4: memref<12x32xf32, #tpu.memory_space<vmem>>, %arg5: memref<24x16xf32, #tpu.memory_space<vmem>>, %arg6: memref<2x32x32xf32, #tpu.memory_space<vmem>>, %arg7: memref<2x16x32xf32, #tpu.memory_space<vmem>>, %arg8: memref<2x1x32xf32, #tpu.memory_space<vmem>>, %arg9: memref<2x32x32xf32, #tpu.memory_space<vmem>>, %arg10: memref<2x32x32xf32, #tpu.memory_space<vmem>>, %arg11: memref<2x32x32xf32, #tpu.memory_space<vmem>>, %arg12: memref<2x1x32xf32, #tpu.memory_space<vmem>>, %arg13: memref<2x1x32xf32, #tpu.memory_space<vmem>>, %arg14: memref<2x1x1xf32, #tpu.memory_space<vmem>>, %arg15: memref<2x32x32xf32, #tpu.memory_space<vmem>>, %arg16: memref<2x1x32xf32, #tpu.memory_space<vmem>>, %arg17: memref<2x32x32xf32, #tpu.memory_space<vmem>>, %arg18: memref<2x32x32xf32, #tpu.memory_space<vmem>>, %arg19: memref<2x1x32xf32, #tpu.memory_space<vmem>>, %arg20: memref<12x32xf32, #tpu.memory_space<vmem>>, %arg21: memref<2x32xf32, #tpu.memory_space<vmem>>, %arg22: memref<24x32xf32, #tpu.memory_space<vmem>>) attributes {dimension_semantics = [], scalar_prefetch = 0 : i64, scratch_operands = 1 : i64, tpu.core_type = #tpu.core_type<tc>} {
    %0 = tpu.iota {dimensions = array<i32: 1>} : vector<24x12xi32>
    %c0 = arith.constant 0 : index
    %c0_0 = arith.constant 0 : index
    %1 = vector.load %arg1[%c0, %c0_0] : memref<24x1xi32, #tpu.memory_space<vmem>>, vector<24x1xi32>
    %2 = vector.broadcast %1 : vector<24x1xi32> to vector<24x12xi32>
    %3 = arith.cmpi eq, %0, %2 : vector<24x12xi32>
    %4 = arith.extui %3 : vector<24x12xi1> to vector<24x12xi32>
    %5 = arith.sitofp %4 : vector<24x12xi32> to vector<24x12xf32>
    %6 = tpu.iota {dimensions = array<i32: 0>} : vector<2x12xi32>
    %c0_1 = arith.constant 0 : index
    %c0_2 = arith.constant 0 : index
    %7 = vector.load %arg3[%c0_1, %c0_2] : memref<1x12xi32, #tpu.memory_space<vmem>>, vector<1x12xi32>
    %8 = vector.broadcast %7 : vector<1x12xi32> to vector<2x12xi32>
    %9 = arith.cmpi eq, %6, %8 : vector<2x12xi32>
    %10 = tpu.iota {dimensions = array<i32: 1>} : vector<12x2xi32>
    %c0_3 = arith.constant 0 : index
    %c0_4 = arith.constant 0 : index
    %11 = vector.load %arg2[%c0_3, %c0_4] : memref<12x1xi32, #tpu.memory_space<vmem>>, vector<12x1xi32>
    %12 = vector.broadcast %11 : vector<12x1xi32> to vector<12x2xi32>
    %13 = arith.cmpi eq, %10, %12 : vector<12x2xi32>
    %14 = arith.extui %13 : vector<12x2xi1> to vector<12x2xi32>
    %15 = arith.sitofp %14 : vector<12x2xi32> to vector<12x2xf32>
    %16 = tpu.iota {dimensions = array<i32: 0>} : vector<12x1xi32>
    %c0_5 = arith.constant 0 : index
    %c0_6 = arith.constant 0 : index
    %17 = vector.load %arg4[%c0_5, %c0_6] : memref<12x32xf32, #tpu.memory_space<vmem>>, vector<12x32xf32>
    %c0_7 = arith.constant 0 : index
    %c0_8 = arith.constant 0 : index
    %18 = vector.load %arg5[%c0_7, %c0_8] : memref<24x16xf32, #tpu.memory_space<vmem>>, vector<24x16xf32>
    %cst = arith.constant 0.000000e+00 : f32
    %19 = vector.broadcast %cst : f32 to vector<2x32xf32>
    %c0_9 = arith.constant 0 : index
    %c0_10 = arith.constant 0 : index
    %c0_11 = arith.constant 0 : index
    %20 = vector.load %arg6[%c0_9, %c0_10, %c0_11] : memref<2x32x32xf32, #tpu.memory_space<vmem>>, vector<1x32x32xf32>
    %21 = vector.shape_cast %20 : vector<1x32x32xf32> to vector<32x32xf32>
    %cst_12 = arith.constant dense<0.000000e+00> : vector<12x32xf32>
    %22 = tpu.matmul %17, %21, %cst_12 {dimension_numbers = #tpu.dot_dimension_numbers<[1], [0], [0], [1], [0, 0, 1, 1], [], []>} : vector<12x32xf32>, vector<32x32xf32>, vector<12x32xf32> -> vector<12x32xf32>
    %cst_13 = arith.constant dense<0.000000e+00> : vector<24x32xf32>
    %23 = tpu.matmul %5, %22, %cst_13 {dimension_numbers = #tpu.dot_dimension_numbers<[1], [0], [0], [1], [0, 0, 1, 1], [], []>} : vector<24x12xf32>, vector<12x32xf32>, vector<24x32xf32> -> vector<24x32xf32>
    %c0_14 = arith.constant 0 : index
    %c0_15 = arith.constant 0 : index
    %c0_16 = arith.constant 0 : index
    %24 = vector.load %arg7[%c0_14, %c0_15, %c0_16] : memref<2x16x32xf32, #tpu.memory_space<vmem>>, vector<1x16x32xf32>
    %25 = vector.shape_cast %24 : vector<1x16x32xf32> to vector<16x32xf32>
    %cst_17 = arith.constant dense<0.000000e+00> : vector<24x32xf32>
    %26 = tpu.matmul %18, %25, %cst_17 {dimension_numbers = #tpu.dot_dimension_numbers<[1], [0], [0], [1], [0, 0, 1, 1], [], []>} : vector<24x16xf32>, vector<16x32xf32>, vector<24x32xf32> -> vector<24x32xf32>
    %27 = arith.addf %23, %26 : vector<24x32xf32>
    %c0_18 = arith.constant 0 : index
    %c0_19 = arith.constant 0 : index
    %c0_20 = arith.constant 0 : index
    %28 = vector.load %arg8[%c0_18, %c0_19, %c0_20] : memref<2x1x32xf32, #tpu.memory_space<vmem>>, vector<1x1x32xf32>
    %29 = vector.shape_cast %28 : vector<1x1x32xf32> to vector<1x32xf32>
    %30 = vector.broadcast %29 : vector<1x32xf32> to vector<24x32xf32>
    %31 = arith.addf %27, %30 : vector<24x32xf32>
    %cst_21 = arith.constant 0.000000e+00 : f32
    %32 = vector.broadcast %cst_21 : f32 to vector<24x32xf32>
    %33 = arith.cmpf oge, %31, %32 : vector<24x32xf32>
    %cst_22 = arith.constant 0.00999999977 : f32
    %34 = vector.broadcast %cst_22 : f32 to vector<24x32xf32>
    %35 = arith.mulf %34, %31 : vector<24x32xf32>
    %36 = arith.select %33, %31, %35 : vector<24x32xi1>, vector<24x32xf32>
    %c0_23 = arith.constant 0 : index
    %c0_24 = arith.constant 0 : index
    %37 = vector.load %arg22[%c0_23, %c0_24] : memref<24x32xf32, #tpu.memory_space<vmem>>, vector<24x32xf32>
    tpu.vector_store %arg22[%c0_23, %c0_24], %36 {strides = array<i32>} : memref<24x32xf32, #tpu.memory_space<vmem>>, vector<24x32xf32>,
    %cst_25 = arith.constant -1.000000e+30 : f32
    %38 = vector.broadcast %cst_25 : f32 to vector<12x32xf32>
    %c0_i32 = arith.constant 0 : i32
    %c24_i32 = arith.constant 24 : i32
    %39 = arith.addi %c0_i32, %c24_i32 : i32
    %c1_i32 = arith.constant 1 : i32
    %40 = scf.for %arg23 = %c0_i32 to %39 step %c1_i32 iter_args(%arg24 = %38) -> (vector<12x32xf32>)  : i32 {
      %232 = arith.index_cast %arg23 : i32 to index
      %233 = memref.load %arg0[%232] : memref<24xi32, #tpu.memory_space<smem>>
      %234 = arith.index_cast %arg23 : i32 to index
      %c0_163 = arith.constant 0 : index
      %235 = vector.load %arg22[%234, %c0_163] : memref<24x32xf32, #tpu.memory_space<vmem>>, vector<1x32xf32>
      %236 = vector.broadcast %233 : i32 to vector<12x1xi32>
      %237 = arith.cmpi eq, %16, %236 : vector<12x1xi32>
      %cst_164 = arith.constant -1.000000e+30 : f32
      %238 = vector.shape_cast %237 : vector<12x1xi1> to vector<12x1xi1>
      %239 = vector.broadcast %238 : vector<12x1xi1> to vector<12x32xi1>
      %240 = vector.shape_cast %235 : vector<1x32xf32> to vector<1x32xf32>
      %241 = vector.broadcast %240 : vector<1x32xf32> to vector<12x32xf32>
      %242 = vector.broadcast %cst_164 : f32 to vector<12x32xf32>
      %243 = arith.select %239, %241, %242 : vector<12x32xi1>, vector<12x32xf32>
      %244 = arith.maximumf %arg24, %243 : vector<12x32xf32>
      scf.yield %244 : vector<12x32xf32>
    }
    %c24_i32_26 = arith.constant 24 : i32
    %cst_27 = arith.constant -5.000000e+29 : f32
    %41 = vector.broadcast %cst_27 : f32 to vector<12x32xf32>
    %42 = arith.cmpf ogt, %40, %41 : vector<12x32xf32>
    %cst_28 = arith.constant 0.000000e+00 : f32
    %43 = vector.broadcast %cst_28 : f32 to vector<12x32xf32>
    %44 = arith.select %42, %40, %43 : vector<12x32xi1>, vector<12x32xf32>
    %c0_29 = arith.constant 0 : index
    %c0_30 = arith.constant 0 : index
    %c0_31 = arith.constant 0 : index
    %45 = vector.load %arg10[%c0_29, %c0_30, %c0_31] : memref<2x32x32xf32, #tpu.memory_space<vmem>>, vector<1x32x32xf32>
    %46 = vector.shape_cast %45 : vector<1x32x32xf32> to vector<32x32xf32>
    %cst_32 = arith.constant dense<0.000000e+00> : vector<2x32xf32>
    %47 = tpu.matmul %19, %46, %cst_32 {dimension_numbers = #tpu.dot_dimension_numbers<[1], [0], [0], [1], [0, 0, 1, 1], [], []>} : vector<2x32xf32>, vector<32x32xf32>, vector<2x32xf32> -> vector<2x32xf32>
    %c0_33 = arith.constant 0 : index
    %c0_34 = arith.constant 0 : index
    %c0_35 = arith.constant 0 : index
    %48 = vector.load %arg9[%c0_33, %c0_34, %c0_35] : memref<2x32x32xf32, #tpu.memory_space<vmem>>, vector<1x32x32xf32>
    %49 = vector.shape_cast %48 : vector<1x32x32xf32> to vector<32x32xf32>
    %cst_36 = arith.constant dense<0.000000e+00> : vector<12x32xf32>
    %50 = tpu.matmul %17, %49, %cst_36 {dimension_numbers = #tpu.dot_dimension_numbers<[1], [0], [0], [1], [0, 0, 1, 1], [], []>} : vector<12x32xf32>, vector<32x32xf32>, vector<12x32xf32> -> vector<12x32xf32>
    %cst_37 = arith.constant dense<0.000000e+00> : vector<12x32xf32>
    %51 = tpu.matmul %15, %47, %cst_37 {dimension_numbers = #tpu.dot_dimension_numbers<[1], [0], [0], [1], [0, 0, 1, 1], [], []>} : vector<12x2xf32>, vector<2x32xf32>, vector<12x32xf32> -> vector<12x32xf32>
    %52 = arith.addf %50, %51 : vector<12x32xf32>
    %c0_38 = arith.constant 0 : index
    %c0_39 = arith.constant 0 : index
    %c0_40 = arith.constant 0 : index
    %53 = vector.load %arg11[%c0_38, %c0_39, %c0_40] : memref<2x32x32xf32, #tpu.memory_space<vmem>>, vector<1x32x32xf32>
    %54 = vector.shape_cast %53 : vector<1x32x32xf32> to vector<32x32xf32>
    %cst_41 = arith.constant dense<0.000000e+00> : vector<12x32xf32>
    %55 = tpu.matmul %44, %54, %cst_41 {dimension_numbers = #tpu.dot_dimension_numbers<[1], [0], [0], [1], [0, 0, 1, 1], [], []>} : vector<12x32xf32>, vector<32x32xf32>, vector<12x32xf32> -> vector<12x32xf32>
    %56 = arith.addf %52, %55 : vector<12x32xf32>
    %c0_42 = arith.constant 0 : index
    %c0_43 = arith.constant 0 : index
    %c0_44 = arith.constant 0 : index
    %57 = vector.load %arg12[%c0_42, %c0_43, %c0_44] : memref<2x1x32xf32, #tpu.memory_space<vmem>>, vector<1x1x32xf32>
    %58 = vector.shape_cast %57 : vector<1x1x32xf32> to vector<1x32xf32>
    %59 = vector.broadcast %58 : vector<1x32xf32> to vector<12x32xf32>
    %60 = arith.addf %56, %59 : vector<12x32xf32>
    %cst_45 = arith.constant 0.000000e+00 : f32
    %61 = vector.broadcast %cst_45 : f32 to vector<12x32xf32>
    %62 = arith.cmpf oge, %60, %61 : vector<12x32xf32>
    %cst_46 = arith.constant 0.00999999977 : f32
    %63 = vector.broadcast %cst_46 : f32 to vector<12x32xf32>
    %64 = arith.mulf %63, %60 : vector<12x32xf32>
    %65 = arith.select %62, %60, %64 : vector<12x32xi1>, vector<12x32xf32>
    %66 = arith.addf %65, %17 : vector<12x32xf32>
    %c0_47 = arith.constant 0 : index
    %c0_48 = arith.constant 0 : index
    %c0_49 = arith.constant 0 : index
    %67 = vector.load %arg15[%c0_47, %c0_48, %c0_49] : memref<2x32x32xf32, #tpu.memory_space<vmem>>, vector<1x32x32xf32>
    %68 = vector.shape_cast %67 : vector<1x32x32xf32> to vector<32x32xf32>
    %cst_50 = arith.constant dense<0.000000e+00> : vector<12x32xf32>
    %69 = tpu.matmul %66, %68, %cst_50 {dimension_numbers = #tpu.dot_dimension_numbers<[1], [0], [0], [1], [0, 0, 1, 1], [], []>} : vector<12x32xf32>, vector<32x32xf32>, vector<12x32xf32> -> vector<12x32xf32>
    %c0_51 = arith.constant 0 : index
    %c0_52 = arith.constant 0 : index
    %c0_53 = arith.constant 0 : index
    %70 = vector.load %arg16[%c0_51, %c0_52, %c0_53] : memref<2x1x32xf32, #tpu.memory_space<vmem>>, vector<1x1x32xf32>
    %71 = vector.shape_cast %70 : vector<1x1x32xf32> to vector<1x32xf32>
    %72 = vector.broadcast %71 : vector<1x32xf32> to vector<12x32xf32>
    %73 = arith.addf %69, %72 : vector<12x32xf32>
    %cst_54 = arith.constant 0.000000e+00 : f32
    %74 = vector.broadcast %cst_54 : f32 to vector<12x32xf32>
    %75 = arith.cmpf oge, %73, %74 : vector<12x32xf32>
    %cst_55 = arith.constant 0.00999999977 : f32
    %76 = vector.broadcast %cst_55 : f32 to vector<12x32xf32>
    %77 = arith.mulf %76, %73 : vector<12x32xf32>
    %78 = arith.select %75, %73, %77 : vector<12x32xi1>, vector<12x32xf32>
    %c0_56 = arith.constant 0 : index
    %c0_57 = arith.constant 0 : index
    %c0_58 = arith.constant 0 : index
    %79 = vector.load %arg13[%c0_56, %c0_57, %c0_58] : memref<2x1x32xf32, #tpu.memory_space<vmem>>, vector<1x1x32xf32>
    %80 = vector.shape_cast %79 : vector<1x1x32xf32> to vector<1x32xf32>
    %cst_59 = arith.constant dense<0.000000e+00> : vector<1x12xf32>
    %81 = tpu.matmul %80, %66, %cst_59 {dimension_numbers = #tpu.dot_dimension_numbers<[1], [1], [0], [0], [0, 0, 1, 0], [], []>} : vector<1x32xf32>, vector<12x32xf32>, vector<1x12xf32> -> vector<1x12xf32>
    %c0_60 = arith.constant 0 : index
    %c0_61 = arith.constant 0 : index
    %c0_62 = arith.constant 0 : index
    %82 = vector.load %arg14[%c0_60, %c0_61, %c0_62] : memref<2x1x1xf32, #tpu.memory_space<vmem>>, vector<1x1x1xf32>
    %83 = vector.shape_cast %82 : vector<1x1x1xf32> to vector<1x1xf32>
    %84 = vector.broadcast %83 : vector<1x1xf32> to vector<1x12xf32>
    %85 = arith.addf %81, %84 : vector<1x12xf32>
    %cst_63 = arith.constant -1.000000e+30 : f32
    %86 = vector.shape_cast %85 : vector<1x12xf32> to vector<1x12xf32>
    %87 = vector.broadcast %86 : vector<1x12xf32> to vector<2x12xf32>
    %88 = vector.broadcast %cst_63 : f32 to vector<2x12xf32>
    %89 = arith.select %9, %87, %88 : vector<2x12xi1>, vector<2x12xf32>
    %cst_64 = arith.constant dense<0xFF800000> : vector<2xf32>
    %90 = vector.multi_reduction <maximumf>, %89, %cst_64 [1] : vector<2x12xf32> to vector<2xf32>
    %91 = vector.shape_cast %90 : vector<2xf32> to vector<2x1xf32>
    %92 = vector.broadcast %85 : vector<1x12xf32> to vector<2x12xf32>
    %93 = vector.broadcast %91 : vector<2x1xf32> to vector<2x12xf32>
    %94 = arith.subf %92, %93 : vector<2x12xf32>
    %cst_65 = arith.constant -1.000000e+02 : f32
    %95 = vector.broadcast %cst_65 : f32 to vector<2x12xf32>
    %96 = arith.select %9, %94, %95 : vector<2x12xi1>, vector<2x12xf32>
    %97 = math.exp %96 : vector<2x12xf32>
    %cst_66 = arith.constant 0.000000e+00 : f32
    %98 = vector.broadcast %cst_66 : f32 to vector<2x12xf32>
    %99 = arith.select %9, %97, %98 : vector<2x12xi1>, vector<2x12xf32>
    %cst_67 = arith.constant dense<0.000000e+00> : vector<2xf32>
    %100 = vector.multi_reduction <add>, %99, %cst_67 [1] : vector<2x12xf32> to vector<2xf32>
    %101 = vector.shape_cast %100 : vector<2xf32> to vector<2x1xf32>
    %cst_68 = arith.constant 1.000000e-30 : f32
    %102 = vector.broadcast %cst_68 : f32 to vector<2x1xf32>
    %103 = arith.maximumf %101, %102 : vector<2x1xf32>
    %104 = tpu.reciprocal %103 {approx = true} : vector<2x1xf32> -> vector<2x1xf32>
    %105 = vector.broadcast %104 : vector<2x1xf32> to vector<2x12xf32>
    %106 = arith.mulf %99, %105 : vector<2x12xf32>
    %cst_69 = arith.constant dense<0.000000e+00> : vector<2x32xf32>
    %107 = tpu.matmul %106, %78, %cst_69 {dimension_numbers = #tpu.dot_dimension_numbers<[1], [0], [0], [1], [0, 0, 1, 1], [], []>} : vector<2x12xf32>, vector<12x32xf32>, vector<2x32xf32> -> vector<2x32xf32>
    %c0_70 = arith.constant 0 : index
    %c0_71 = arith.constant 0 : index
    %c0_72 = arith.constant 0 : index
    %108 = vector.load %arg17[%c0_70, %c0_71, %c0_72] : memref<2x32x32xf32, #tpu.memory_space<vmem>>, vector<1x32x32xf32>
    %109 = vector.shape_cast %108 : vector<1x32x32xf32> to vector<32x32xf32>
    %cst_73 = arith.constant dense<0.000000e+00> : vector<2x32xf32>
    %110 = tpu.matmul %107, %109, %cst_73 {dimension_numbers = #tpu.dot_dimension_numbers<[1], [0], [0], [1], [0, 0, 1, 1], [], []>} : vector<2x32xf32>, vector<32x32xf32>, vector<2x32xf32> -> vector<2x32xf32>
    %c0_74 = arith.constant 0 : index
    %c0_75 = arith.constant 0 : index
    %c0_76 = arith.constant 0 : index
    %111 = vector.load %arg18[%c0_74, %c0_75, %c0_76] : memref<2x32x32xf32, #tpu.memory_space<vmem>>, vector<1x32x32xf32>
    %112 = vector.shape_cast %111 : vector<1x32x32xf32> to vector<32x32xf32>
    %cst_77 = arith.constant dense<0.000000e+00> : vector<2x32xf32>
    %113 = tpu.matmul %19, %112, %cst_77 {dimension_numbers = #tpu.dot_dimension_numbers<[1], [0], [0], [1], [0, 0, 1, 1], [], []>} : vector<2x32xf32>, vector<32x32xf32>, vector<2x32xf32> -> vector<2x32xf32>
    %114 = arith.addf %110, %113 : vector<2x32xf32>
    %c0_78 = arith.constant 0 : index
    %c0_79 = arith.constant 0 : index
    %c0_80 = arith.constant 0 : index
    %115 = vector.load %arg19[%c0_78, %c0_79, %c0_80] : memref<2x1x32xf32, #tpu.memory_space<vmem>>, vector<1x1x32xf32>
    %116 = vector.shape_cast %115 : vector<1x1x32xf32> to vector<1x32xf32>
    %117 = vector.broadcast %116 : vector<1x32xf32> to vector<2x32xf32>
    %118 = arith.addf %114, %117 : vector<2x32xf32>
    %cst_81 = arith.constant 0.000000e+00 : f32
    %119 = vector.broadcast %cst_81 : f32 to vector<2x32xf32>
    %120 = arith.cmpf oge, %118, %119 : vector<2x32xf32>
    %cst_82 = arith.constant 0.00999999977 : f32
    %121 = vector.broadcast %cst_82 : f32 to vector<2x32xf32>
    %122 = arith.mulf %121, %118 : vector<2x32xf32>
    %123 = arith.select %120, %118, %122 : vector<2x32xi1>, vector<2x32xf32>
    %124 = arith.addf %123, %19 : vector<2x32xf32>
    %c1 = arith.constant 1 : index
    %c0_83 = arith.constant 0 : index
    %c0_84 = arith.constant 0 : index
    %125 = vector.load %arg6[%c1, %c0_83, %c0_84] : memref<2x32x32xf32, #tpu.memory_space<vmem>>, vector<1x32x32xf32>
    %126 = vector.shape_cast %125 : vector<1x32x32xf32> to vector<32x32xf32>
    %cst_85 = arith.constant dense<0.000000e+00> : vector<12x32xf32>
    %127 = tpu.matmul %66, %126, %cst_85 {dimension_numbers = #tpu.dot_dimension_numbers<[1], [0], [0], [1], [0, 0, 1, 1], [], []>} : vector<12x32xf32>, vector<32x32xf32>, vector<12x32xf32> -> vector<12x32xf32>
    %cst_86 = arith.constant dense<0.000000e+00> : vector<24x32xf32>
    %128 = tpu.matmul %5, %127, %cst_86 {dimension_numbers = #tpu.dot_dimension_numbers<[1], [0], [0], [1], [0, 0, 1, 1], [], []>} : vector<24x12xf32>, vector<12x32xf32>, vector<24x32xf32> -> vector<24x32xf32>
    %c1_87 = arith.constant 1 : index
    %c0_88 = arith.constant 0 : index
    %c0_89 = arith.constant 0 : index
    %129 = vector.load %arg7[%c1_87, %c0_88, %c0_89] : memref<2x16x32xf32, #tpu.memory_space<vmem>>, vector<1x16x32xf32>
    %130 = vector.shape_cast %129 : vector<1x16x32xf32> to vector<16x32xf32>
    %cst_90 = arith.constant dense<0.000000e+00> : vector<24x32xf32>
    %131 = tpu.matmul %18, %130, %cst_90 {dimension_numbers = #tpu.dot_dimension_numbers<[1], [0], [0], [1], [0, 0, 1, 1], [], []>} : vector<24x16xf32>, vector<16x32xf32>, vector<24x32xf32> -> vector<24x32xf32>
    %132 = arith.addf %128, %131 : vector<24x32xf32>
    %c1_91 = arith.constant 1 : index
    %c0_92 = arith.constant 0 : index
    %c0_93 = arith.constant 0 : index
    %133 = vector.load %arg8[%c1_91, %c0_92, %c0_93] : memref<2x1x32xf32, #tpu.memory_space<vmem>>, vector<1x1x32xf32>
    %134 = vector.shape_cast %133 : vector<1x1x32xf32> to vector<1x32xf32>
    %135 = vector.broadcast %134 : vector<1x32xf32> to vector<24x32xf32>
    %136 = arith.addf %132, %135 : vector<24x32xf32>
    %cst_94 = arith.constant 0.000000e+00 : f32
    %137 = vector.broadcast %cst_94 : f32 to vector<24x32xf32>
    %138 = arith.cmpf oge, %136, %137 : vector<24x32xf32>
    %cst_95 = arith.constant 0.00999999977 : f32
    %139 = vector.broadcast %cst_95 : f32 to vector<24x32xf32>
    %140 = arith.mulf %139, %136 : vector<24x32xf32>
    %141 = arith.select %138, %136, %140 : vector<24x32xi1>, vector<24x32xf32>
    %c0_96 = arith.constant 0 : index
    %c0_97 = arith.constant 0 : index
    %142 = vector.load %arg22[%c0_96, %c0_97] : memref<24x32xf32, #tpu.memory_space<vmem>>, vector<24x32xf32>
    tpu.vector_store %arg22[%c0_96, %c0_97], %141 {strides = array<i32>} : memref<24x32xf32, #tpu.memory_space<vmem>>, vector<24x32xf32>,
    %cst_98 = arith.constant -1.000000e+30 : f32
    %143 = vector.broadcast %cst_98 : f32 to vector<12x32xf32>
    %c0_i32_99 = arith.constant 0 : i32
    %c24_i32_100 = arith.constant 24 : i32
    %144 = arith.addi %c0_i32_99, %c24_i32_100 : i32
    %c1_i32_101 = arith.constant 1 : i32
    %145 = scf.for %arg23 = %c0_i32_99 to %144 step %c1_i32_101 iter_args(%arg24 = %143) -> (vector<12x32xf32>)  : i32 {
      %232 = arith.index_cast %arg23 : i32 to index
      %233 = memref.load %arg0[%232] : memref<24xi32, #tpu.memory_space<smem>>
      %234 = arith.index_cast %arg23 : i32 to index
      %c0_163 = arith.constant 0 : index
      %235 = vector.load %arg22[%234, %c0_163] : memref<24x32xf32, #tpu.memory_space<vmem>>, vector<1x32xf32>
      %236 = vector.broadcast %233 : i32 to vector<12x1xi32>
      %237 = arith.cmpi eq, %16, %236 : vector<12x1xi32>
      %cst_164 = arith.constant -1.000000e+30 : f32
      %238 = vector.shape_cast %237 : vector<12x1xi1> to vector<12x1xi1>
      %239 = vector.broadcast %238 : vector<12x1xi1> to vector<12x32xi1>
      %240 = vector.shape_cast %235 : vector<1x32xf32> to vector<1x32xf32>
      %241 = vector.broadcast %240 : vector<1x32xf32> to vector<12x32xf32>
      %242 = vector.broadcast %cst_164 : f32 to vector<12x32xf32>
      %243 = arith.select %239, %241, %242 : vector<12x32xi1>, vector<12x32xf32>
      %244 = arith.maximumf %arg24, %243 : vector<12x32xf32>
      scf.yield %244 : vector<12x32xf32>
    }
    %c24_i32_102 = arith.constant 24 : i32
    %cst_103 = arith.constant -5.000000e+29 : f32
    %146 = vector.broadcast %cst_103 : f32 to vector<12x32xf32>
    %147 = arith.cmpf ogt, %145, %146 : vector<12x32xf32>
    %cst_104 = arith.constant 0.000000e+00 : f32
    %148 = vector.broadcast %cst_104 : f32 to vector<12x32xf32>
    %149 = arith.select %147, %145, %148 : vector<12x32xi1>, vector<12x32xf32>
    %c1_105 = arith.constant 1 : index
    %c0_106 = arith.constant 0 : index
    %c0_107 = arith.constant 0 : index
    %150 = vector.load %arg10[%c1_105, %c0_106, %c0_107] : memref<2x32x32xf32, #tpu.memory_space<vmem>>, vector<1x32x32xf32>
    %151 = vector.shape_cast %150 : vector<1x32x32xf32> to vector<32x32xf32>
    %cst_108 = arith.constant dense<0.000000e+00> : vector<2x32xf32>
    %152 = tpu.matmul %124, %151, %cst_108 {dimension_numbers = #tpu.dot_dimension_numbers<[1], [0], [0], [1], [0, 0, 1, 1], [], []>} : vector<2x32xf32>, vector<32x32xf32>, vector<2x32xf32> -> vector<2x32xf32>
    %c1_109 = arith.constant 1 : index
    %c0_110 = arith.constant 0 : index
    %c0_111 = arith.constant 0 : index
    %153 = vector.load %arg9[%c1_109, %c0_110, %c0_111] : memref<2x32x32xf32, #tpu.memory_space<vmem>>, vector<1x32x32xf32>
    %154 = vector.shape_cast %153 : vector<1x32x32xf32> to vector<32x32xf32>
    %cst_112 = arith.constant dense<0.000000e+00> : vector<12x32xf32>
    %155 = tpu.matmul %66, %154, %cst_112 {dimension_numbers = #tpu.dot_dimension_numbers<[1], [0], [0], [1], [0, 0, 1, 1], [], []>} : vector<12x32xf32>, vector<32x32xf32>, vector<12x32xf32> -> vector<12x32xf32>
    %cst_113 = arith.constant dense<0.000000e+00> : vector<12x32xf32>
    %156 = tpu.matmul %15, %152, %cst_113 {dimension_numbers = #tpu.dot_dimension_numbers<[1], [0], [0], [1], [0, 0, 1, 1], [], []>} : vector<12x2xf32>, vector<2x32xf32>, vector<12x32xf32> -> vector<12x32xf32>
    %157 = arith.addf %155, %156 : vector<12x32xf32>
    %c1_114 = arith.constant 1 : index
    %c0_115 = arith.constant 0 : index
    %c0_116 = arith.constant 0 : index
    %158 = vector.load %arg11[%c1_114, %c0_115, %c0_116] : memref<2x32x32xf32, #tpu.memory_space<vmem>>, vector<1x32x32xf32>
    %159 = vector.shape_cast %158 : vector<1x32x32xf32> to vector<32x32xf32>
    %cst_117 = arith.constant dense<0.000000e+00> : vector<12x32xf32>
    %160 = tpu.matmul %149, %159, %cst_117 {dimension_numbers = #tpu.dot_dimension_numbers<[1], [0], [0], [1], [0, 0, 1, 1], [], []>} : vector<12x32xf32>, vector<32x32xf32>, vector<12x32xf32> -> vector<12x32xf32>
    %161 = arith.addf %157, %160 : vector<12x32xf32>
    %c1_118 = arith.constant 1 : index
    %c0_119 = arith.constant 0 : index
    %c0_120 = arith.constant 0 : index
    %162 = vector.load %arg12[%c1_118, %c0_119, %c0_120] : memref<2x1x32xf32, #tpu.memory_space<vmem>>, vector<1x1x32xf32>
    %163 = vector.shape_cast %162 : vector<1x1x32xf32> to vector<1x32xf32>
    %164 = vector.broadcast %163 : vector<1x32xf32> to vector<12x32xf32>
    %165 = arith.addf %161, %164 : vector<12x32xf32>
    %cst_121 = arith.constant 0.000000e+00 : f32
    %166 = vector.broadcast %cst_121 : f32 to vector<12x32xf32>
    %167 = arith.cmpf oge, %165, %166 : vector<12x32xf32>
    %cst_122 = arith.constant 0.00999999977 : f32
    %168 = vector.broadcast %cst_122 : f32 to vector<12x32xf32>
    %169 = arith.mulf %168, %165 : vector<12x32xf32>
    %170 = arith.select %167, %165, %169 : vector<12x32xi1>, vector<12x32xf32>
    %171 = arith.addf %170, %66 : vector<12x32xf32>
    %c1_123 = arith.constant 1 : index
    %c0_124 = arith.constant 0 : index
    %c0_125 = arith.constant 0 : index
    %172 = vector.load %arg15[%c1_123, %c0_124, %c0_125] : memref<2x32x32xf32, #tpu.memory_space<vmem>>, vector<1x32x32xf32>
    %173 = vector.shape_cast %172 : vector<1x32x32xf32> to vector<32x32xf32>
    %cst_126 = arith.constant dense<0.000000e+00> : vector<12x32xf32>
    %174 = tpu.matmul %171, %173, %cst_126 {dimension_numbers = #tpu.dot_dimension_numbers<[1], [0], [0], [1], [0, 0, 1, 1], [], []>} : vector<12x32xf32>, vector<32x32xf32>, vector<12x32xf32> -> vector<12x32xf32>
    %c1_127 = arith.constant 1 : index
    %c0_128 = arith.constant 0 : index
    %c0_129 = arith.constant 0 : index
    %175 = vector.load %arg16[%c1_127, %c0_128, %c0_129] : memref<2x1x32xf32, #tpu.memory_space<vmem>>, vector<1x1x32xf32>
    %176 = vector.shape_cast %175 : vector<1x1x32xf32> to vector<1x32xf32>
    %177 = vector.broadcast %176 : vector<1x32xf32> to vector<12x32xf32>
    %178 = arith.addf %174, %177 : vector<12x32xf32>
    %cst_130 = arith.constant 0.000000e+00 : f32
    %179 = vector.broadcast %cst_130 : f32 to vector<12x32xf32>
    %180 = arith.cmpf oge, %178, %179 : vector<12x32xf32>
    %cst_131 = arith.constant 0.00999999977 : f32
    %181 = vector.broadcast %cst_131 : f32 to vector<12x32xf32>
    %182 = arith.mulf %181, %178 : vector<12x32xf32>
    %183 = arith.select %180, %178, %182 : vector<12x32xi1>, vector<12x32xf32>
    %c1_132 = arith.constant 1 : index
    %c0_133 = arith.constant 0 : index
    %c0_134 = arith.constant 0 : index
    %184 = vector.load %arg13[%c1_132, %c0_133, %c0_134] : memref<2x1x32xf32, #tpu.memory_space<vmem>>, vector<1x1x32xf32>
    %185 = vector.shape_cast %184 : vector<1x1x32xf32> to vector<1x32xf32>
    %cst_135 = arith.constant dense<0.000000e+00> : vector<1x12xf32>
    %186 = tpu.matmul %185, %171, %cst_135 {dimension_numbers = #tpu.dot_dimension_numbers<[1], [1], [0], [0], [0, 0, 1, 0], [], []>} : vector<1x32xf32>, vector<12x32xf32>, vector<1x12xf32> -> vector<1x12xf32>
    %c1_136 = arith.constant 1 : index
    %c0_137 = arith.constant 0 : index
    %c0_138 = arith.constant 0 : index
    %187 = vector.load %arg14[%c1_136, %c0_137, %c0_138] : memref<2x1x1xf32, #tpu.memory_space<vmem>>, vector<1x1x1xf32>
    %188 = vector.shape_cast %187 : vector<1x1x1xf32> to vector<1x1xf32>
    %189 = vector.broadcast %188 : vector<1x1xf32> to vector<1x12xf32>
    %190 = arith.addf %186, %189 : vector<1x12xf32>
    %cst_139 = arith.constant -1.000000e+30 : f32
    %191 = vector.shape_cast %190 : vector<1x12xf32> to vector<1x12xf32>
    %192 = vector.broadcast %191 : vector<1x12xf32> to vector<2x12xf32>
    %193 = vector.broadcast %cst_139 : f32 to vector<2x12xf32>
    %194 = arith.select %9, %192, %193 : vector<2x12xi1>, vector<2x12xf32>
    %cst_140 = arith.constant dense<0xFF800000> : vector<2xf32>
    %195 = vector.multi_reduction <maximumf>, %194, %cst_140 [1] : vector<2x12xf32> to vector<2xf32>
    %196 = vector.shape_cast %195 : vector<2xf32> to vector<2x1xf32>
    %197 = vector.broadcast %190 : vector<1x12xf32> to vector<2x12xf32>
    %198 = vector.broadcast %196 : vector<2x1xf32> to vector<2x12xf32>
    %199 = arith.subf %197, %198 : vector<2x12xf32>
    %cst_141 = arith.constant -1.000000e+02 : f32
    %200 = vector.broadcast %cst_141 : f32 to vector<2x12xf32>
    %201 = arith.select %9, %199, %200 : vector<2x12xi1>, vector<2x12xf32>
    %202 = math.exp %201 : vector<2x12xf32>
    %cst_142 = arith.constant 0.000000e+00 : f32
    %203 = vector.broadcast %cst_142 : f32 to vector<2x12xf32>
    %204 = arith.select %9, %202, %203 : vector<2x12xi1>, vector<2x12xf32>
    %cst_143 = arith.constant dense<0.000000e+00> : vector<2xf32>
    %205 = vector.multi_reduction <add>, %204, %cst_143 [1] : vector<2x12xf32> to vector<2xf32>
    %206 = vector.shape_cast %205 : vector<2xf32> to vector<2x1xf32>
    %cst_144 = arith.constant 1.000000e-30 : f32
    %207 = vector.broadcast %cst_144 : f32 to vector<2x1xf32>
    %208 = arith.maximumf %206, %207 : vector<2x1xf32>
    %209 = tpu.reciprocal %208 {approx = true} : vector<2x1xf32> -> vector<2x1xf32>
    %210 = vector.broadcast %209 : vector<2x1xf32> to vector<2x12xf32>
    %211 = arith.mulf %204, %210 : vector<2x12xf32>
    %cst_145 = arith.constant dense<0.000000e+00> : vector<2x32xf32>
    %212 = tpu.matmul %211, %183, %cst_145 {dimension_numbers = #tpu.dot_dimension_numbers<[1], [0], [0], [1], [0, 0, 1, 1], [], []>} : vector<2x12xf32>, vector<12x32xf32>, vector<2x32xf32> -> vector<2x32xf32>
    %c1_146 = arith.constant 1 : index
    %c0_147 = arith.constant 0 : index
    %c0_148 = arith.constant 0 : index
    %213 = vector.load %arg17[%c1_146, %c0_147, %c0_148] : memref<2x32x32xf32, #tpu.memory_space<vmem>>, vector<1x32x32xf32>
    %214 = vector.shape_cast %213 : vector<1x32x32xf32> to vector<32x32xf32>
    %cst_149 = arith.constant dense<0.000000e+00> : vector<2x32xf32>
    %215 = tpu.matmul %212, %214, %cst_149 {dimension_numbers = #tpu.dot_dimension_numbers<[1], [0], [0], [1], [0, 0, 1, 1], [], []>} : vector<2x32xf32>, vector<32x32xf32>, vector<2x32xf32> -> vector<2x32xf32>
    %c1_150 = arith.constant 1 : index
    %c0_151 = arith.constant 0 : index
    %c0_152 = arith.constant 0 : index
    %216 = vector.load %arg18[%c1_150, %c0_151, %c0_152] : memref<2x32x32xf32, #tpu.memory_space<vmem>>, vector<1x32x32xf32>
    %217 = vector.shape_cast %216 : vector<1x32x32xf32> to vector<32x32xf32>
    %cst_153 = arith.constant dense<0.000000e+00> : vector<2x32xf32>
    %218 = tpu.matmul %124, %217, %cst_153 {dimension_numbers = #tpu.dot_dimension_numbers<[1], [0], [0], [1], [0, 0, 1, 1], [], []>} : vector<2x32xf32>, vector<32x32xf32>, vector<2x32xf32> -> vector<2x32xf32>
    %219 = arith.addf %215, %218 : vector<2x32xf32>
    %c1_154 = arith.constant 1 : index
    %c0_155 = arith.constant 0 : index
    %c0_156 = arith.constant 0 : index
    %220 = vector.load %arg19[%c1_154, %c0_155, %c0_156] : memref<2x1x32xf32, #tpu.memory_space<vmem>>, vector<1x1x32xf32>
    %221 = vector.shape_cast %220 : vector<1x1x32xf32> to vector<1x32xf32>
    %222 = vector.broadcast %221 : vector<1x32xf32> to vector<2x32xf32>
    %223 = arith.addf %219, %222 : vector<2x32xf32>
    %cst_157 = arith.constant 0.000000e+00 : f32
    %224 = vector.broadcast %cst_157 : f32 to vector<2x32xf32>
    %225 = arith.cmpf oge, %223, %224 : vector<2x32xf32>
    %cst_158 = arith.constant 0.00999999977 : f32
    %226 = vector.broadcast %cst_158 : f32 to vector<2x32xf32>
    %227 = arith.mulf %226, %223 : vector<2x32xf32>
    %228 = arith.select %225, %223, %227 : vector<2x32xi1>, vector<2x32xf32>
    %229 = arith.addf %228, %124 : vector<2x32xf32>
    %c0_159 = arith.constant 0 : index
    %c0_160 = arith.constant 0 : index
    %230 = vector.load %arg20[%c0_159, %c0_160] : memref<12x32xf32, #tpu.memory_space<vmem>>, vector<12x32xf32>
    tpu.vector_store %arg20[%c0_159, %c0_160], %171 {strides = array<i32>} : memref<12x32xf32, #tpu.memory_space<vmem>>, vector<12x32xf32>,
    %c0_161 = arith.constant 0 : index
    %c0_162 = arith.constant 0 : index
    %231 = vector.load %arg21[%c0_161, %c0_162] : memref<2x32xf32, #tpu.memory_space<vmem>>, vector<2x32xf32>
    tpu.vector_store %arg21[%c0_161, %c0_162], %229 {strides = array<i32>} : memref<2x32xf32, #tpu.memory_space<vmem>>, vector<2x32xf32>,
    return
  }
}

</mosaic_0001>

<llo_original>
// kernel: pallas_forward.1
$region0: #{pallas_forward.1}
  #allocation0 [shape = 'u32[]', space=smem, size = 0x4, offset = 0x4, fixed_abs, tag = 'smem constant byte address 0x4 - core index']
  #allocation1 [shape = 'u32[144,128]{1,0:T(1,128)}', space=vmem, size = 0x12000, scoped, tag = 'internal scratch']
  #allocation2 [shape = 'f32[24,32]{1,0:T(8,128)}', space=vmem, size = 0x3000, scoped, tag = 'scratch operand']
  %s0 = inlined_call_operand.vmem [shape: s32[24], index: 0, kind: input, shape index: {}]
  %s1 = inlined_call_operand.vmem [shape: s32[24,1], index: 1, kind: input, shape index: {}]
  %s2 = inlined_call_operand.vmem [shape: s32[12,1], index: 2, kind: input, shape index: {}]
  %s3 = inlined_call_operand.vmem [shape: s32[1,12], index: 3, kind: input, shape index: {}]
  %s4 = inlined_call_operand.vmem [shape: f32[12,32], index: 4, kind: input, shape index: {}]
  %s5 = inlined_call_operand.vmem [shape: f32[24,16], index: 5, kind: input, shape index: {}]
  %s6 = inlined_call_operand.vmem [shape: f32[2,32,32], index: 6, kind: input, shape index: {}]
  %s7 = inlined_call_operand.vmem [shape: f32[2,16,32], index: 7, kind: input, shape index: {}]
  %s8 = inlined_call_operand.vmem [shape: f32[2,1,32], index: 8, kind: input, shape index: {}]
  %s9 = inlined_call_operand.vmem [shape: f32[2,32,32], index: 9, kind: input, shape index: {}]
  %s10 = inlined_call_operand.vmem [shape: f32[2,32,32], index: 10, kind: input, shape index: {}]
  %s11 = inlined_call_operand.vmem [shape: f32[2,32,32], index: 11, kind: input, shape index: {}]
  %s12 = inlined_call_operand.vmem [shape: f32[2,1,32], index: 12, kind: input, shape index: {}]
  %s13 = inlined_call_operand.vmem [shape: f32[2,1,32], index: 13, kind: input, shape index: {}]
  %s14 = inlined_call_operand.vmem [shape: f32[2,1,1], index: 14, kind: input, shape index: {}]
  %s15 = inlined_call_operand.vmem [shape: f32[2,32,32], index: 15, kind: input, shape index: {}]
  %s16 = inlined_call_operand.vmem [shape: f32[2,1,32], index: 16, kind: input, shape index: {}]
  %s17 = inlined_call_operand.vmem [shape: f32[2,32,32], index: 17, kind: input, shape index: {}]
  %s18 = inlined_call_operand.vmem [shape: f32[2,32,32], index: 18, kind: input, shape index: {}]
  %s19 = inlined_call_operand.vmem [shape: f32[2,1,32], index: 19, kind: input, shape index: {}]
  %s20 = inlined_call_operand.hbm [shape: f32[12,32], index: 20, kind: output, shape index: {0}]
  %s21 = inlined_call_operand.hbm [shape: f32[2,32], index: 21, kind: output, shape index: {1}]
  %22 = xla_tuple %s20, %s21
  %s23 = sld [smem:[#allocation0]]
  $region116: #{pallas_forward.1} parent=0
    _
  %s25 = ssub.s32 1, %s23
  %s26 = scalar_select 0, %s25, %s23
  $region1: #{pallas_forward.1} parent=0
    #allocation3 [shape = 'u8[512]{0}', space=smem, size = 0x200, scoped, tag = 'input window, operand 0, single buffered']
    #allocation4 [shape = 's32[1]{0}', space=sflag, size = 0x4, scoped, tag = 'scoped memory for pallas_forward.1']
    #allocation5 [shape = 's32[1]{0}', space=sflag, size = 0x4, scoped, tag = 'scoped memory for pallas_forward.1']
    #allocation6 [shape = 'u8[8192]{0}', space=vmem, size = 0x2000, scoped, tag = 'output window, operand 0, single buffered']
    #allocation7 [shape = 'u8[1024]{0}', space=vmem, size = 0x400, scoped, tag = 'output window, operand 1, single buffered']
    #allocation8 [shape = 's32[1]{0}', space=sflag, size = 0x4, scoped, tag = 'scoped memory for pallas_forward.1']
    %27 = vsyncpa [#allocation5], 0
    %28 = vsyncpa [#allocation4], 0
    %29 = vsyncpa [#allocation8], 0
    // Predicated region
    $region2: #{pallas_forward.1} parent=1 // pred_check
      _
    $region3: #{pallas_forward.1} parent=1 // pred_check_branch
      %31 = sbr.rel (0) target = $region5
    $region4: #{pallas_forward.1} parent=1 // pred_region
      %s33 = ssub.s32 16, 16
      %34 = vsyncadd [#allocation5], %s33
      %s36 = sshll.u32 %s0, 4
      %s37 = int_to_ptr.vmem [resolvable:$true] %s36
      %39 = dma.vmem_to_smem %s37, 16, [#allocation3], [#allocation5]
    $region5: #{pallas_forward.1} parent=1 // pred_fallthru
      _
    // Predicated region
    $region6: #{pallas_forward.1} parent=1 // pred_check
      _
    $region7: #{pallas_forward.1} parent=1 // pred_check_branch
      %41 = sbr.rel (0) target = $region9
    $region8: #{pallas_forward.1} parent=1 // pred_region
      _
    $region9: #{pallas_forward.1} parent=1 // pred_fallthru
      _
    // Predicated region
    $region10: #{pallas_forward.1} parent=1 // pred_check
      _
    $region11: #{pallas_forward.1} parent=1 // pred_check_branch
      %43 = sbr.rel (0) target = $region13
    $region12: #{pallas_forward.1} parent=1 // pred_region
      _
    $region13: #{pallas_forward.1} parent=1 // pred_fallthru
      _
    // Predicated region
    $region14: #{pallas_forward.1} parent=1 // pred_check
      _
    $region15: #{pallas_forward.1} parent=1 // pred_check_branch
      %45 = sbr.rel (0) target = $region17
    $region16: #{pallas_forward.1} parent=1 // pred_region
      _
    $region17: #{pallas_forward.1} parent=1 // pred_fallthru
      _
    // Predicated region
    $region18: #{pallas_forward.1} parent=1 // pred_check
      _
    $region19: #{pallas_forward.1} parent=1 // pred_check_branch
      %47 = sbr.rel (0) target = $region21
    $region20: #{pallas_forward.1} parent=1 // pred_region
      _
    $region21: #{pallas_forward.1} parent=1 // pred_fallthru
      _
    // Predicated region
    $region22: #{pallas_forward.1} parent=1 // pred_check
      _
    $region23: #{pallas_forward.1} parent=1 // pred_check_branch
      %49 = sbr.rel (0) target = $region25
    $region24: #{pallas_forward.1} parent=1 // pred_region
      _
    $region25: #{pallas_forward.1} parent=1 // pred_fallthru
      _
    // Predicated region
    $region26: #{pallas_forward.1} parent=1 // pred_check
      _
    $region27: #{pallas_forward.1} parent=1 // pred_check_branch
      %51 = sbr.rel (0) target = $region29
    $region28: #{pallas_forward.1} parent=1 // pred_region
      _
    $region29: #{pallas_forward.1} parent=1 // pred_fallthru
      _
    // Predicated region
    $region30: #{pallas_forward.1} parent=1 // pred_check
      _
    $region31: #{pallas_forward.1} parent=1 // pred_check_branch
      %53 = sbr.rel (0) target = $region33
    $region32: #{pallas_forward.1} parent=1 // pred_region
      _
    $region33: #{pallas_forward.1} parent=1 // pred_fallthru
      _
    // Predicated region
    $region34: #{pallas_forward.1} parent=1 // pred_check
      _
    $region35: #{pallas_forward.1} parent=1 // pred_check_branch
      %55 = sbr.rel (0) target = $region37
    $region36: #{pallas_forward.1} parent=1 // pred_region
      _
    $region37: #{pallas_forward.1} parent=1 // pred_fallthru
      _
    // Predicated region
    $region38: #{pallas_forward.1} parent=1 // pred_check
      _
    $region39: #{pallas_forward.1} parent=1 // pred_check_branch
      %57 = sbr.rel (0) target = $region41
    $region40: #{pallas_forward.1} parent=1 // pred_region
      _
    $region41: #{pallas_forward.1} parent=1 // pred_fallthru
      _
    // Predicated region
    $region42: #{pallas_forward.1} parent=1 // pred_check
      _
    $region43: #{pallas_forward.1} parent=1 // pred_check_branch
      %59 = sbr.rel (0) target = $region45
    $region44: #{pallas_forward.1} parent=1 // pred_region
      _
    $region45: #{pallas_forward.1} parent=1 // pred_fallthru
      _
    // Predicated region
    $region46: #{pallas_forward.1} parent=1 // pred_check
      _
    $region47: #{pallas_forward.1} parent=1 // pred_check_branch
      %61 = sbr.rel (0) target = $region49
    $region48: #{pallas_forward.1} parent=1 // pred_region
      _
    $region49: #{pallas_forward.1} parent=1 // pred_fallthru
      _
    // Predicated region
    $region50: #{pallas_forward.1} parent=1 // pred_check
      _
    $region51: #{pallas_forward.1} parent=1 // pred_check_branch
      %63 = sbr.rel (0) target = $region53
    $region52: #{pallas_forward.1} parent=1 // pred_region
      _
    $region53: #{pallas_forward.1} parent=1 // pred_fallthru
      _
    // Predicated region
    $region54: #{pallas_forward.1} parent=1 // pred_check
      _
    $region55: #{pallas_forward.1} parent=1 // pred_check_branch
      %65 = sbr.rel (0) target = $region57
    $region56: #{pallas_forward.1} parent=1 // pred_region
      _
    $region57: #{pallas_forward.1} parent=1 // pred_fallthru
      _
    // Predicated region
    $region58: #{pallas_forward.1} parent=1 // pred_check
      _
    $region59: #{pallas_forward.1} parent=1 // pred_check_branch
      %67 = sbr.rel (0) target = $region61
    $region60: #{pallas_forward.1} parent=1 // pred_region
      _
    $region61: #{pallas_forward.1} parent=1 // pred_fallthru
      _
    // Predicated region
    $region62: #{pallas_forward.1} parent=1 // pred_check
      _
    $region63: #{pallas_forward.1} parent=1 // pred_check_branch
      %69 = sbr.rel (0) target = $region65
    $region64: #{pallas_forward.1} parent=1 // pred_region
      _
    $region65: #{pallas_forward.1} parent=1 // pred_fallthru
      _
    // Predicated region
    $region66: #{pallas_forward.1} parent=1 // pred_check
      _
    $region67: #{pallas_forward.1} parent=1 // pred_check_branch
      %71 = sbr.rel (0) target = $region69
    $region68: #{pallas_forward.1} parent=1 // pred_region
      _
    $region69: #{pallas_forward.1} parent=1 // pred_fallthru
      _
    // Predicated region
    $region70: #{pallas_forward.1} parent=1 // pred_check
      _
    $region71: #{pallas_forward.1} parent=1 // pred_check_branch
      %73 = sbr.rel (0) target = $region73
    $region72: #{pallas_forward.1} parent=1 // pred_region
      _
    $region73: #{pallas_forward.1} parent=1 // pred_fallthru
      _
    // Predicated region
    $region74: #{pallas_forward.1} parent=1 // pred_check
      _
    $region75: #{pallas_forward.1} parent=1 // pred_check_branch
      %75 = sbr.rel (0) target = $region77
    $region76: #{pallas_forward.1} parent=1 // pred_region
      _
    $region77: #{pallas_forward.1} parent=1 // pred_fallthru
      _
    // Predicated region
    $region78: #{pallas_forward.1} parent=1 // pred_check
      _
    $region79: #{pallas_forward.1} parent=1 // pred_check_branch
      %77 = sbr.rel (0) target = $region81
    $region80: #{pallas_forward.1} parent=1 // pred_region
      _
    $region81: #{pallas_forward.1} parent=1 // pred_fallthru
      _
    // Predicated region
    $region82: #{pallas_forward.1} parent=1 // pred_check
      _
    $region83: #{pallas_forward.1} parent=1 // pred_check_branch
      %79 = sbr.rel (0) target = $region85
    $region84: #{pallas_forward.1} parent=1 // pred_region
      %80 = dma.done [#allocation5], 16
    $region85: #{pallas_forward.1} parent=1 // pred_fallthru
      _
    %81 = sfence
    %v82 = vlaneseq
    %v83 = vand.u32 %v82, 127
    %v84 = vld [vmem:[%s1] sm:$0xff]
    %v85 = vld [vmem:[%s1 + $0x8] sm:$0xff]
    %v86 = vld [vmem:[%s1 + $0x10] sm:$0xff]
    %87 = vset.pattern.permute.xlu0 0
    %88 = vperm.xlu0 %87, %v84
    %v89 = vpop.permute.xlu0 %88
    %90 = vset.pattern.permute.xlu0 0
    %91 = vperm.xlu0 %90, %v85
    %v92 = vpop.permute.xlu0 %91
    %93 = vset.pattern.permute.xlu0 0
    %94 = vperm.xlu0 %93, %v86
    %v95 = vpop.permute.xlu0 %94
    %vm96 = vcmp.eq.s32.totalorder %v83, %v89
    %vm97 = vcmp.eq.s32.totalorder %v83, %v92
    %vm98 = vcmp.eq.s32.totalorder %v83, %v95
    %v99 = vsel %vm96, 1, 0
    %v100 = vsel %vm97, 1, 0
    %v101 = vsel %vm98, 1, 0
    %v102 = vcvt.s32.f32 %v99
    %v103 = vcvt.s32.f32 %v100
    %v104 = vcvt.s32.f32 %v101
    %v105 = vlaneseq
    %v106 = vshrl.u32 %v105, 7
    %v107 = vld [vmem:[%s3] sm:$0x1]
    %v108 = vlaneseq
    %v109 = vshrl.u32 %v108, 7
    %v110 = vsub.s32 0, %v109
    %v111 = vrot.slane %v107, %v110
    %vm112 = vcmp.eq.s32.totalorder %v106, %v111
    %v113 = vld [vmem:[%s2] sm:$0xff]
    %v114 = vld [vmem:[%s2 + $0x8] sm:$0xf]
    %115 = vset.pattern.permute.xlu0 0
    %116 = vperm.xlu0 %115, %v113
    %v117 = vpop.permute.xlu0 %116
    %118 = vset.pattern.permute.xlu0 0
    %119 = vperm.xlu0 %118, %v114
    %v120 = vpop.permute.xlu0 %119
    %vm121 = vcmp.eq.s32.totalorder %v83, %v117
    %vm122 = vcmp.eq.s32.totalorder %v83, %v120
    %v123 = vsel %vm121, 1, 0
    %v124 = vsel %vm122, 1, 0
    %v125 = vcvt.s32.f32 %v123
    %v126 = vcvt.s32.f32 %v124
    %v127 = vadd.s32 %v106, 8
    %v128 = vld [vmem:[%s4] sm:$0xff]
    %v129 = vld [vmem:[%s4 + $0x8] sm:$0xf]
    %v130 = vld [vmem:[%s5] sm:$0xff]
    %v131 = vld [vmem:[%s5 + $0x8] sm:$0xff]
    %v132 = vld [vmem:[%s5 + $0x10] sm:$0xff]
    %v133 = vld [vmem:[%s6] sm:$0xff]
    %v134 = vld [vmem:[%s6 + $0x8] sm:$0xff]
    %v135 = vld [vmem:[%s6 + $0x10] sm:$0xff]
    %v136 = vld [vmem:[%s6 + $0x18] sm:$0xff]
    %vm137 = vcmask 261120
    %v139 = vsel %vm137, %v128, 0
    %v142 = vsel %vm137, %v129, 0
    %144 = vmatprep.subr.mxu0 0.0
    %145 = vmatpush1.msra.mxu0 %v133
    %146 = vmatprep.subr.mxu0 0.0
    %147 = vmatpush1.msra.mxu0 %v134
    %148 = vmatprep.subr.mxu0 0.0
    %149 = vmatpush1.msra.mxu0 %v135
    %150 = vmatprep.subr.mxu0 0.0
    %151 = vmatpush1.msra.mxu0 %v136
    %152 = vmatprep.subr.mxu0 0.0
    %153 = vmatpush1.msra.mxu0 0.0
    %154 = vmatprep.subr.mxu0 0.0
    %155 = vmatpush1.msra.mxu0 0.0
    %156 = vmatprep.subr.mxu0 0.0
    %157 = vmatpush1.msra.mxu0 0.0
    %158 = vmatprep.subr.mxu0 0.0
    %159 = vmatpush1.msra.mxu0 0.0
    %160 = vmatprep.subr.mxu0 0.0
    %161 = vmatpush1.msra.mxu0 0.0
    %162 = vmatprep.subr.mxu0 0.0
    %163 = vmatpush1.msra.mxu0 0.0
    %164 = vmatprep.subr.mxu0 0.0
    %165 = vmatpush1.msra.mxu0 0.0
    %166 = vmatprep.subr.mxu0 0.0
    %167 = vmatpush1.msra.mxu0 0.0
    %168 = vmatprep.subr.mxu0 0.0
    %169 = vmatpush1.msra.mxu0 0.0
    %170 = vmatprep.subr.mxu0 0.0
    %171 = vmatpush1.msra.mxu0 0.0
    %172 = vmatprep.subr.mxu0 0.0
    %173 = vmatpush1.msra.mxu0 0.0
    %174 = vmatprep.subr.mxu0 0.0
    %175 = vmatpush1.msra.mxu0 0.0
    %176 = vmatprep.subr.mxu0 0.0
    %177 = vmatpush1.msra.mxu0 0.0
    %178 = vmatprep.subr.mxu0 0.0
    %179 = vmatpush1.msra.mxu0 0.0
    %180 = vmatprep.subr.mxu0 0.0
    %181 = vmatpush1.msra.mxu0 0.0
    %182 = vmatprep.subr.mxu0 0.0
    %183 = vmatpush1.msra.mxu0 0.0
    %184 = vmatprep.subr.mxu0 0.0
    %185 = vmatpush1.msra.mxu0 0.0
    %186 = vmatprep.subr.mxu0 0.0
    %187 = vmatpush1.msra.mxu0 0.0
    %188 = vmatprep.subr.mxu0 0.0
    %189 = vmatpush1.msra.mxu0 0.0
    %190 = vmatprep.subr.mxu0 0.0
    %191 = vmatpush1.msra.mxu0 0.0
    %192 = vmatprep.subr.mxu0 0.0
    %193 = vmatpush1.msra.mxu0 0.0
    %194 = vmatprep.subr.mxu0 0.0
    %195 = vmatpush1.msra.mxu0 0.0
    %196 = vmatprep.subr.mxu0 0.0
    %197 = vmatpush1.msra.mxu0 0.0
    %198 = vmatprep.subr.mxu0 0.0
    %199 = vmatpush1.msra.mxu0 0.0
    %200 = vmatprep.subr.mxu0 0.0
    %201 = vmatpush1.msra.mxu0 0.0
    %202 = vmatprep.subr.mxu0 0.0
    %203 = vmatpush1.msra.mxu0 0.0
    %204 = vmatprep.subr.mxu0 0.0
    %205 = vmatpush1.msra.mxu0 0.0
    %206 = vmatprep.subr.mxu0 0.0
    %207 = vmatpush1.msra.mxu0 0.0
    %208 = vmatprep.mubr.f32.mxu0 0.0
    %209 = vmatmul.mubr.f32.gmra.mrb[0].mxu0 %v139
    %v210 = vpop.f32.mrb[0].mxu0
    %v211 = vadd.f32 0.0, %v210
    %v212 = vpop.f32.mrb[0].mxu0
    %213 = vmatprep.mubr.f32.mxu0 0.0
    %214 = vmatmul.mubr.f32.gmra.mrb[0].mxu0 %v142
    %v215 = vpop.f32.mrb[0].mxu0
    %v216 = vadd.f32 0.0, %v215
    %v217 = vpop.f32.mrb[0].mxu0
    %218 = vdwg.mxu0
    %v219 = vld [vmem:[%s7] sm:$0xff]
    %v220 = vld [vmem:[%s7 + $0x8] sm:$0xff]
    %vm221 = vcmask 130048
    %v223 = vsel %vm221, %v130, 0
    %v226 = vsel %vm221, %v131, 0
    %v229 = vsel %vm221, %v132, 0
    %231 = vmatprep.subr.mxu0 0.0
    %232 = vmatpush1.msra.mxu0 %v219
    %233 = vmatprep.subr.mxu0 0.0
    %234 = vmatpush1.msra.mxu0 %v220
    %235 = vmatprep.subr.mxu0 0.0
    %236 = vmatpush1.msra.mxu0 0.0
    %237 = vmatprep.subr.mxu0 0.0
    %238 = vmatpush1.msra.mxu0 0.0
    %239 = vmatprep.subr.mxu0 0.0
    %240 = vmatpush1.msra.mxu0 0.0
    %241 = vmatprep.subr.mxu0 0.0
    %242 = vmatpush1.msra.mxu0 0.0
    %243 = vmatprep.subr.mxu0 0.0
    %244 = vmatpush1.msra.mxu0 0.0
    %245 = vmatprep.subr.mxu0 0.0
    %246 = vmatpush1.msra.mxu0 0.0
    %247 = vmatprep.subr.mxu0 0.0
    %248 = vmatpush1.msra.mxu0 0.0
    %249 = vmatprep.subr.mxu0 0.0
    %250 = vmatpush1.msra.mxu0 0.0
    %251 = vmatprep.subr.mxu0 0.0
    %252 = vmatpush1.msra.mxu0 0.0
    %253 = vmatprep.subr.mxu0 0.0
    %254 = vmatpush1.msra.mxu0 0.0
    %255 = vmatprep.subr.mxu0 0.0
    %256 = vmatpush1.msra.mxu0 0.0
    %257 = vmatprep.subr.mxu0 0.0
    %258 = vmatpush1.msra.mxu0 0.0
    %259 = vmatprep.subr.mxu0 0.0
    %260 = vmatpush1.msra.mxu0 0.0
    %261 = vmatprep.subr.mxu0 0.0
    %262 = vmatpush1.msra.mxu0 0.0
    %263 = vmatprep.subr.mxu0 0.0
    %264 = vmatpush1.msra.mxu0 0.0
    %265 = vmatprep.subr.mxu0 0.0
    %266 = vmatpush1.msra.mxu0 0.0
    %267 = vmatprep.subr.mxu0 0.0
    %268 = vmatpush1.msra.mxu0 0.0
    %269 = vmatprep.subr.mxu0 0.0
    %270 = vmatpush1.msra.mxu0 0.0
    %271 = vmatprep.subr.mxu0 0.0
    %272 = vmatpush1.msra.mxu0 0.0
    %273 = vmatprep.subr.mxu0 0.0
    %274 = vmatpush1.msra.mxu0 0.0
    %275 = vmatprep.subr.mxu0 0.0
    %276 = vmatpush1.msra.mxu0 0.0
    %277 = vmatprep.subr.mxu0 0.0
    %278 = vmatpush1.msra.mxu0 0.0
    %279 = vmatprep.subr.mxu0 0.0
    %280 = vmatpush1.msra.mxu0 0.0
    %281 = vmatprep.subr.mxu0 0.0
    %282 = vmatpush1.msra.mxu0 0.0
    %283 = vmatprep.subr.mxu0 0.0
    %284 = vmatpush1.msra.mxu0 0.0
    %285 = vmatprep.subr.mxu0 0.0
    %286 = vmatpush1.msra.mxu0 0.0
    %287 = vmatprep.subr.mxu0 0.0
    %288 = vmatpush1.msra.mxu0 0.0
    %289 = vmatprep.subr.mxu0 0.0
    %290 = vmatpush1.msra.mxu0 0.0
    %291 = vmatprep.subr.mxu0 0.0
    %292 = vmatpush1.msra.mxu0 0.0
    %293 = vmatprep.subr.mxu0 0.0
    %294 = vmatpush1.msra.mxu0 0.0
    %295 = vmatprep.mubr.f32.mxu0 0.0
    %296 = vmatmul.mubr.f32.gmra.mrb[0].mxu0 %v223
    %v297 = vpop.f32.mrb[0].mxu0
    %v298 = vadd.f32 0.0, %v297
    %v299 = vpop.f32.mrb[0].mxu0
    %300 = vmatprep.mubr.f32.mxu0 0.0
    %301 = vmatmul.mubr.f32.gmra.mrb[0].mxu0 %v226
    %v302 = vpop.f32.mrb[0].mxu0
    %v303 = vadd.f32 0.0, %v302
    %v304 = vpop.f32.mrb[0].mxu0
    %305 = vmatprep.mubr.f32.mxu0 0.0
    %306 = vmatmul.mubr.f32.gmra.mrb[0].mxu0 %v229
    %v307 = vpop.f32.mrb[0].mxu0
    %v308 = vadd.f32 0.0, %v307
    %v309 = vpop.f32.mrb[0].mxu0
    %310 = vdwg.mxu0
    %vm311 = vcmask 97280
    %v313 = vsel %vm311, %v102, 0
    %v316 = vsel %vm311, %v103, 0
    %v319 = vsel %vm311, %v104, 0
    %vm321 = vcmask 1043456
    %v323 = vsel %vm321, %v216, 0
    %325 = vmatprep.subr.mxu0 0.0
    %326 = vmatpush1.msra.mxu0 %v211
    %327 = vmatprep.subr.mxu0 0.0
    %328 = vmatpush1.msra.mxu0 %v323
    %329 = vmatprep.subr.mxu0 0.0
    %330 = vmatpush1.msra.mxu0 0.0
    %331 = vmatprep.subr.mxu0 0.0
    %332 = vmatpush1.msra.mxu0 0.0
    %333 = vmatprep.subr.mxu0 0.0
    %334 = vmatpush1.msra.mxu0 0.0
    %335 = vmatprep.subr.mxu0 0.0
    %336 = vmatpush1.msra.mxu0 0.0
    %337 = vmatprep.subr.mxu0 0.0
    %338 = vmatpush1.msra.mxu0 0.0
    %339 = vmatprep.subr.mxu0 0.0
    %340 = vmatpush1.msra.mxu0 0.0
    %341 = vmatprep.subr.mxu0 0.0
    %342 = vmatpush1.msra.mxu0 0.0
    %343 = vmatprep.subr.mxu0 0.0
    %344 = vmatpush1.msra.mxu0 0.0
    %345 = vmatprep.subr.mxu0 0.0
    %346 = vmatpush1.msra.mxu0 0.0
    %347 = vmatprep.subr.mxu0 0.0
    %348 = vmatpush1.msra.mxu0 0.0
    %349 = vmatprep.subr.mxu0 0.0
    %350 = vmatpush1.msra.mxu0 0.0
    %351 = vmatprep.subr.mxu0 0.0
    %352 = vmatpush1.msra.mxu0 0.0
    %353 = vmatprep.subr.mxu0 0.0
    %354 = vmatpush1.msra.mxu0 0.0
    %355 = vmatprep.subr.mxu0 0.0
    %356 = vmatpush1.msra.mxu0 0.0
    %357 = vmatprep.subr.mxu0 0.0
    %358 = vmatpush1.msra.mxu0 0.0
    %359 = vmatprep.subr.mxu0 0.0
    %360 = vmatpush1.msra.mxu0 0.0
    %361 = vmatprep.subr.mxu0 0.0
    %362 = vmatpush1.msra.mxu0 0.0
    %363 = vmatprep.subr.mxu0 0.0
    %364 = vmatpush1.msra.mxu0 0.0
    %365 = vmatprep.subr.mxu0 0.0
    %366 = vmatpush1.msra.mxu0 0.0
    %367 = vmatprep.subr.mxu0 0.0
    %368 = vmatpush1.msra.mxu0 0.0
    %369 = vmatprep.subr.mxu0 0.0
    %370 = vmatpush1.msra.mxu0 0.0
    %371 = vmatprep.subr.mxu0 0.0
    %372 = vmatpush1.msra.mxu0 0.0
    %373 = vmatprep.subr.mxu0 0.0
    %374 = vmatpush1.msra.mxu0 0.0
    %375 = vmatprep.subr.mxu0 0.0
    %376 = vmatpush1.msra.mxu0 0.0
    %377 = vmatprep.subr.mxu0 0.0
    %378 = vmatpush1.msra.mxu0 0.0
    %379 = vmatprep.subr.mxu0 0.0
    %380 = vmatpush1.msra.mxu0 0.0
    %381 = vmatprep.subr.mxu0 0.0
    %382 = vmatpush1.msra.mxu0 0.0
    %383 = vmatprep.subr.mxu0 0.0
    %384 = vmatpush1.msra.mxu0 0.0
    %385 = vmatprep.subr.mxu0 0.0
    %386 = vmatpush1.msra.mxu0 0.0
    %387 = vmatprep.subr.mxu0 0.0
    %388 = vmatpush1.msra.mxu0 0.0
    %389 = vmatprep.mubr.f32.mxu0 0.0
    %390 = vmatmul.mubr.f32.gmra.mrb[0].mxu0 %v313
    %v391 = vpop.f32.mrb[0].mxu0
    %v392 = vadd.f32 %v298, %v391
    %v393 = vpop.f32.mrb[0].mxu0
    %394 = vmatprep.mubr.f32.mxu0 0.0
    %395 = vmatmul.mubr.f32.gmra.mrb[0].mxu0 %v316
    %v396 = vpop.f32.mrb[0].mxu0
    %v397 = vadd.f32 %v303, %v396
    %v398 = vpop.f32.mrb[0].mxu0
    %399 = vmatprep.mubr.f32.mxu0 0.0
    %400 = vmatmul.mubr.f32.gmra.mrb[0].mxu0 %v319
    %v401 = vpop.f32.mrb[0].mxu0
    %v402 = vadd.f32 %v308, %v401
    %v403 = vpop.f32.mrb[0].mxu0
    %404 = vdwg.mxu0
    %v405 = vld [vmem:[%s8] sm:$0x1]
    %v407 = vlaneseq
    %v408 = vshrl.u32 %v407, 7
    %v409 = vsub.s32 0, %v408
    %v410 = vrot.slane %v405, %v409
    %v412 = vadd.f32 %v392, %v410
    %v413 = vadd.f32 %v397, %v410
    %v414 = vadd.f32 %v402, %v410
    %vm415 = vcmp.ge.f32.partialorder %v412, 0.0
    %vm416 = vcmp.ge.f32.partialorder %v413, 0.0
    %vm417 = vcmp.ge.f32.partialorder %v414, 0.0
    %v418 = vmul.f32 %v412, 0.01
    %v419 = vmul.f32 %v413, 0.01
    %v420 = vmul.f32 %v414, 0.01
    %v421 = vsel %vm415, %v412, %v418
    %v422 = vsel %vm416, %v413, %v419
    %v423 = vsel %vm417, %v414, %v420
    %424 = vst.msk [vmem:[#allocation2] sm:$0xff] %vm137, %v421
    %425 = vst.msk [vmem:[#allocation2 + $0x8] sm:$0xff] %vm137, %v422
    %426 = vst.msk [vmem:[#allocation2 + $0x10] sm:$0xff] %vm137, %v423
    loop: start=0, step=1, limit=24
    $region86: #{pallas_forward.1} parent=1 // loop_pre_header
      _
    $region87: #{pallas_forward.1} parent=1 // loop_header
      %s428 = sphi 0, %s432
      %p429 = scmp.ge.s32.totalorder %s428, 24
      %v433 = vphi -1e+30, %v451
      %v434 = vphi -1e+30, %v452
    $region88: #{pallas_forward.1} parent=1 // loop_header_branch
      %431 = sbr.rel (%p429) target = $region92
    $region89: #{pallas_forward.1} parent=1 // loop_body
      %s435 = sld [smem:[#allocation3 + %s428]]
      %s436 = scalar_lea.vmem [#allocation2], %s428
      %v437 = vld [vmem:[%s436] sm:$0x1]
      %v438 = vstv %s435
      %vm439 = vcmp.eq.s32.totalorder %v106, %v438
      %vm440 = vcmp.eq.s32.totalorder %v127, %v438
      %v441 = vsel %vm439, 1, 0
      %v442 = vsel %vm440, 1, 0
      %vm443 = vcmp.eq.s32.totalorder %v441, 1
      %vm444 = vcmp.eq.s32.totalorder %v442, 1
      %v445 = vlaneseq
      %v446 = vshrl.u32 %v445, 7
      %v447 = vsub.s32 0, %v446
      %v448 = vrot.slane %v437, %v447
      %v449 = vsel %vm443, %v448, -1e+30
      %v450 = vsel %vm444, %v448, -1e+30
      %v451 = vmax.f32 %v433, %v449
      %v452 = vmax.f32 %v434, %v450
    $region90: #{pallas_forward.1} parent=1 // loop_footer
      %s432 = sadd.s32 1, %s428
    $region91: #{pallas_forward.1} parent=1 // loop_footer_branch
      %427 = sbr.rel target = $region87
    $region92: #{pallas_forward.1} parent=1 // loop_exit
      _
    %vm453 = vcmp.gt.f32.partialorder %v433, -5e+29
    %vm454 = vcmp.gt.f32.partialorder %v434, -5e+29
    %v455 = vsel %vm453, %v433, 0.0
    %v456 = vsel %vm454, %v434, 0.0
    %v457 = vld [vmem:[%s10] sm:$0xff]
    %v458 = vld [vmem:[%s10 + $0x8] sm:$0xff]
    %v459 = vld [vmem:[%s10 + $0x10] sm:$0xff]
    %v460 = vld [vmem:[%s10 + $0x18] sm:$0xff]
    %v462 = vsel %vm137, 0.0, 0
    %464 = vmatprep.subr.mxu0 0.0
    %465 = vmatpush1.msra.mxu0 %v457
    %466 = vmatprep.subr.mxu0 0.0
    %467 = vmatpush1.msra.mxu0 %v458
    %468 = vmatprep.subr.mxu0 0.0
    %469 = vmatpush1.msra.mxu0 %v459
    %470 = vmatprep.subr.mxu0 0.0
    %471 = vmatpush1.msra.mxu0 %v460
    %472 = vmatprep.subr.mxu0 0.0
    %473 = vmatpush1.msra.mxu0 0.0
    %474 = vmatprep.subr.mxu0 0.0
    %475 = vmatpush1.msra.mxu0 0.0
    %476 = vmatprep.subr.mxu0 0.0
    %477 = vmatpush1.msra.mxu0 0.0
    %478 = vmatprep.subr.mxu0 0.0
    %479 = vmatpush1.msra.mxu0 0.0
    %480 = vmatprep.subr.mxu0 0.0
    %481 = vmatpush1.msra.mxu0 0.0
    %482 = vmatprep.subr.mxu0 0.0
    %483 = vmatpush1.msra.mxu0 0.0
    %484 = vmatprep.subr.mxu0 0.0
    %485 = vmatpush1.msra.mxu0 0.0
    %486 = vmatprep.subr.mxu0 0.0
    %487 = vmatpush1.msra.mxu0 0.0
    %488 = vmatprep.subr.mxu0 0.0
    %489 = vmatpush1.msra.mxu0 0.0
    %490 = vmatprep.subr.mxu0 0.0
    %491 = vmatpush1.msra.mxu0 0.0
    %492 = vmatprep.subr.mxu0 0.0
    %493 = vmatpush1.msra.mxu0 0.0
    %494 = vmatprep.subr.mxu0 0.0
    %495 = vmatpush1.msra.mxu0 0.0
    %496 = vmatprep.subr.mxu0 0.0
    %497 = vmatpush1.msra.mxu0 0.0
    %498 = vmatprep.subr.mxu0 0.0
    %499 = vmatpush1.msra.mxu0 0.0
    %500 = vmatprep.subr.mxu0 0.0
    %501 = vmatpush1.msra.mxu0 0.0
    %502 = vmatprep.subr.mxu0 0.0
    %503 = vmatpush1.msra.mxu0 0.0
    %504 = vmatprep.subr.mxu0 0.0
    %505 = vmatpush1.msra.mxu0 0.0
    %506 = vmatprep.subr.mxu0 0.0
    %507 = vmatpush1.msra.mxu0 0.0
    %508 = vmatprep.subr.mxu0 0.0
    %509 = vmatpush1.msra.mxu0 0.0
    %510 = vmatprep.subr.mxu0 0.0
    %511 = vmatpush1.msra.mxu0 0.0
    %512 = vmatprep.subr.mxu0 0.0
    %513 = vmatpush1.msra.mxu0 0.0
    %514 = vmatprep.subr.mxu0 0.0
    %515 = vmatpush1.msra.mxu0 0.0
    %516 = vmatprep.subr.mxu0 0.0
    %517 = vmatpush1.msra.mxu0 0.0
    %518 = vmatprep.subr.mxu0 0.0
    %519 = vmatpush1.msra.mxu0 0.0
    %520 = vmatprep.subr.mxu0 0.0
    %521 = vmatpush1.msra.mxu0 0.0
    %522 = vmatprep.subr.mxu0 0.0
    %523 = vmatpush1.msra.mxu0 0.0
    %524 = vmatprep.subr.mxu0 0.0
    %525 = vmatpush1.msra.mxu0 0.0
    %526 = vmatprep.subr.mxu0 0.0
    %527 = vmatpush1.msra.mxu0 0.0
    %528 = vmatprep.mubr.f32.mxu0 0.0
    %529 = vmatmul.mubr.f32.gmra.mrb[0].mxu0 %v462
    %v530 = vpop.f32.mrb[0].mxu0
    %v531 = vadd.f32 0.0, %v530
    %v532 = vpop.f32.mrb[0].mxu0
    %533 = vdwg.mxu0
    %v534 = vld [vmem:[%s9] sm:$0xff]
    %v535 = vld [vmem:[%s9 + $0x8] sm:$0xff]
    %v536 = vld [vmem:[%s9 + $0x10] sm:$0xff]
    %v537 = vld [vmem:[%s9 + $0x18] sm:$0xff]
    %vm538 = vcmask 15360
    %v540 = vsel %vm538, %v125, 0
    %v543 = vsel %vm538, %v126, 0
    %vm545 = vcmask 1041408
    %v547 = vsel %vm545, %v531, 0
    %549 = vmatprep.subr.mxu0 0.0
    %550 = vmatpush1.msra.mxu0 %v547
    %551 = vmatprep.subr.mxu0 0.0
    %552 = vmatpush1.msra.mxu0 0.0
    %553 = vmatprep.subr.mxu0 0.0
    %554 = vmatpush1.msra.mxu0 0.0
    %555 = vmatprep.subr.mxu0 0.0
    %556 = vmatpush1.msra.mxu0 0.0
    %557 = vmatprep.subr.mxu0 0.0
    %558 = vmatpush1.msra.mxu0 0.0
    %559 = vmatprep.subr.mxu0 0.0
    %560 = vmatpush1.msra.mxu0 0.0
    %561 = vmatprep.subr.mxu0 0.0
    %562 = vmatpush1.msra.mxu0 0.0
    %563 = vmatprep.subr.mxu0 0.0
    %564 = vmatpush1.msra.mxu0 0.0
    %565 = vmatprep.subr.mxu0 0.0
    %566 = vmatpush1.msra.mxu0 0.0
    %567 = vmatprep.subr.mxu0 0.0
    %568 = vmatpush1.msra.mxu0 0.0
    %569 = vmatprep.subr.mxu0 0.0
    %570 = vmatpush1.msra.mxu0 0.0
    %571 = vmatprep.subr.mxu0 0.0
    %572 = vmatpush1.msra.mxu0 0.0
    %573 = vmatprep.subr.mxu0 0.0
    %574 = vmatpush1.msra.mxu0 0.0
    %575 = vmatprep.subr.mxu0 0.0
    %576 = vmatpush1.msra.mxu0 0.0
    %577 = vmatprep.subr.mxu0 0.0
    %578 = vmatpush1.msra.mxu0 0.0
    %579 = vmatprep.subr.mxu0 0.0
    %580 = vmatpush1.msra.mxu0 0.0
    %581 = vmatprep.subr.mxu0 0.0
    %582 = vmatpush1.msra.mxu0 0.0
    %583 = vmatprep.subr.mxu0 0.0
    %584 = vmatpush1.msra.mxu0 0.0
    %585 = vmatprep.subr.mxu0 0.0
    %586 = vmatpush1.msra.mxu0 0.0
    %587 = vmatprep.subr.mxu0 0.0
    %588 = vmatpush1.msra.mxu0 0.0
    %589 = vmatprep.subr.mxu0 0.0
    %590 = vmatpush1.msra.mxu0 0.0
    %591 = vmatprep.subr.mxu0 0.0
    %592 = vmatpush1.msra.mxu0 0.0
    %593 = vmatprep.subr.mxu0 0.0
    %594 = vmatpush1.msra.mxu0 0.0
    %595 = vmatprep.subr.mxu0 0.0
    %596 = vmatpush1.msra.mxu0 0.0
    %597 = vmatprep.subr.mxu0 0.0
    %598 = vmatpush1.msra.mxu0 0.0
    %599 = vmatprep.subr.mxu0 0.0
    %600 = vmatpush1.msra.mxu0 0.0
    %601 = vmatprep.subr.mxu0 0.0
    %602 = vmatpush1.msra.mxu0 0.0
    %603 = vmatprep.subr.mxu0 0.0
    %604 = vmatpush1.msra.mxu0 0.0
    %605 = vmatprep.subr.mxu0 0.0
    %606 = vmatpush1.msra.mxu0 0.0
    %607 = vmatprep.subr.mxu0 0.0
    %608 = vmatpush1.msra.mxu0 0.0
    %609 = vmatprep.subr.mxu0 0.0
    %610 = vmatpush1.msra.mxu0 0.0
    %611 = vmatprep.subr.mxu0 0.0
    %612 = vmatpush1.msra.mxu0 0.0
    %613 = vmatprep.mubr.f32.mxu0 0.0
    %614 = vmatmul.mubr.f32.gmra.mrb[0].mxu0 %v540
    %v615 = vpop.f32.mrb[0].mxu0
    %v616 = vadd.f32 0.0, %v615
    %v617 = vpop.f32.mrb[0].mxu0
    %618 = vmatprep.mubr.f32.mxu0 0.0
    %619 = vmatmul.mubr.f32.gmra.mrb[0].mxu0 %v543
    %v620 = vpop.f32.mrb[0].mxu0
    %v621 = vadd.f32 0.0, %v620
    %v622 = vpop.f32.mrb[0].mxu0
    %623 = vdwg.mxu0
    %624 = vmatprep.subr.mxu0 0.0
    %625 = vmatpush1.msra.mxu0 %v534
    %626 = vmatprep.subr.mxu0 0.0
    %627 = vmatpush1.msra.mxu0 %v535
    %628 = vmatprep.subr.mxu0 0.0
    %629 = vmatpush1.msra.mxu0 %v536
    %630 = vmatprep.subr.mxu0 0.0
    %631 = vmatpush1.msra.mxu0 %v537
    %632 = vmatprep.subr.mxu0 0.0
    %633 = vmatpush1.msra.mxu0 0.0
    %634 = vmatprep.subr.mxu0 0.0
    %635 = vmatpush1.msra.mxu0 0.0
    %636 = vmatprep.subr.mxu0 0.0
    %637 = vmatpush1.msra.mxu0 0.0
    %638 = vmatprep.subr.mxu0 0.0
    %639 = vmatpush1.msra.mxu0 0.0
    %640 = vmatprep.subr.mxu0 0.0
    %641 = vmatpush1.msra.mxu0 0.0
    %642 = vmatprep.subr.mxu0 0.0
    %643 = vmatpush1.msra.mxu0 0.0
    %644 = vmatprep.subr.mxu0 0.0
    %645 = vmatpush1.msra.mxu0 0.0
    %646 = vmatprep.subr.mxu0 0.0
    %647 = vmatpush1.msra.mxu0 0.0
    %648 = vmatprep.subr.mxu0 0.0
    %649 = vmatpush1.msra.mxu0 0.0
    %650 = vmatprep.subr.mxu0 0.0
    %651 = vmatpush1.msra.mxu0 0.0
    %652 = vmatprep.subr.mxu0 0.0
    %653 = vmatpush1.msra.mxu0 0.0
    %654 = vmatprep.subr.mxu0 0.0
    %655 = vmatpush1.msra.mxu0 0.0
    %656 = vmatprep.subr.mxu0 0.0
    %657 = vmatpush1.msra.mxu0 0.0
    %658 = vmatprep.subr.mxu0 0.0
    %659 = vmatpush1.msra.mxu0 0.0
    %660 = vmatprep.subr.mxu0 0.0
    %661 = vmatpush1.msra.mxu0 0.0
    %662 = vmatprep.subr.mxu0 0.0
    %663 = vmatpush1.msra.mxu0 0.0
    %664 = vmatprep.subr.mxu0 0.0
    %665 = vmatpush1.msra.mxu0 0.0
    %666 = vmatprep.subr.mxu0 0.0
    %667 = vmatpush1.msra.mxu0 0.0
    %668 = vmatprep.subr.mxu0 0.0
    %669 = vmatpush1.msra.mxu0 0.0
    %670 = vmatprep.subr.mxu0 0.0
    %671 = vmatpush1.msra.mxu0 0.0
    %672 = vmatprep.subr.mxu0 0.0
    %673 = vmatpush1.msra.mxu0 0.0
    %674 = vmatprep.subr.mxu0 0.0
    %675 = vmatpush1.msra.mxu0 0.0
    %676 = vmatprep.subr.mxu0 0.0
    %677 = vmatpush1.msra.mxu0 0.0
    %678 = vmatprep.subr.mxu0 0.0
    %679 = vmatpush1.msra.mxu0 0.0
    %680 = vmatprep.subr.mxu0 0.0
    %681 = vmatpush1.msra.mxu0 0.0
    %682 = vmatprep.subr.mxu0 0.0
    %683 = vmatpush1.msra.mxu0 0.0
    %684 = vmatprep.subr.mxu0 0.0
    %685 = vmatpush1.msra.mxu0 0.0
    %686 = vmatprep.subr.mxu0 0.0
    %687 = vmatpush1.msra.mxu0 0.0
    %688 = vmatprep.mubr.f32.mxu0 0.0
    %689 = vmatmul.mubr.f32.gmra.mrb[0].mxu0 %v139
    %v690 = vpop.f32.mrb[0].mxu0
    %v691 = vadd.f32 %v616, %v690
    %v692 = vpop.f32.mrb[0].mxu0
    %693 = vmatprep.mubr.f32.mxu0 0.0
    %694 = vmatmul.mubr.f32.gmra.mrb[0].mxu0 %v142
    %v695 = vpop.f32.mrb[0].mxu0
    %v696 = vadd.f32 %v621, %v695
    %v697 = vpop.f32.mrb[0].mxu0
    %698 = vdwg.mxu0
    %v699 = vld [vmem:[%s11] sm:$0xff]
    %v700 = vld [vmem:[%s11 + $0x8] sm:$0xff]
    %v701 = vld [vmem:[%s11 + $0x10] sm:$0xff]
    %v702 = vld [vmem:[%s11 + $0x18] sm:$0xff]
    %v704 = vsel %vm137, %v455, 0
    %v707 = vsel %vm137, %v456, 0
    %709 = vmatprep.subr.mxu0 0.0
    %710 = vmatpush1.msra.mxu0 %v699
    %711 = vmatprep.subr.mxu0 0.0
    %712 = vmatpush1.msra.mxu0 %v700
    %713 = vmatprep.subr.mxu0 0.0
    %714 = vmatpush1.msra.mxu0 %v701
    %715 = vmatprep.subr.mxu0 0.0
    %716 = vmatpush1.msra.mxu0 %v702
    %717 = vmatprep.subr.mxu0 0.0
    %718 = vmatpush1.msra.mxu0 0.0
    %719 = vmatprep.subr.mxu0 0.0
    %720 = vmatpush1.msra.mxu0 0.0
    %721 = vmatprep.subr.mxu0 0.0
    %722 = vmatpush1.msra.mxu0 0.0
    %723 = vmatprep.subr.mxu0 0.0
    %724 = vmatpush1.msra.mxu0 0.0
    %725 = vmatprep.subr.mxu0 0.0
    %726 = vmatpush1.msra.mxu0 0.0
    %727 = vmatprep.subr.mxu0 0.0
    %728 = vmatpush1.msra.mxu0 0.0
    %729 = vmatprep.subr.mxu0 0.0
    %730 = vmatpush1.msra.mxu0 0.0
    %731 = vmatprep.subr.mxu0 0.0
    %732 = vmatpush1.msra.mxu0 0.0
    %733 = vmatprep.subr.mxu0 0.0
    %734 = vmatpush1.msra.mxu0 0.0
    %735 = vmatprep.subr.mxu0 0.0
    %736 = vmatpush1.msra.mxu0 0.0
    %737 = vmatprep.subr.mxu0 0.0
    %738 = vmatpush1.msra.mxu0 0.0
    %739 = vmatprep.subr.mxu0 0.0
    %740 = vmatpush1.msra.mxu0 0.0
    %741 = vmatprep.subr.mxu0 0.0
    %742 = vmatpush1.msra.mxu0 0.0
    %743 = vmatprep.subr.mxu0 0.0
    %744 = vmatpush1.msra.mxu0 0.0
    %745 = vmatprep.subr.mxu0 0.0
    %746 = vmatpush1.msra.mxu0 0.0
    %747 = vmatprep.subr.mxu0 0.0
    %748 = vmatpush1.msra.mxu0 0.0
    %749 = vmatprep.subr.mxu0 0.0
    %750 = vmatpush1.msra.mxu0 0.0
    %751 = vmatprep.subr.mxu0 0.0
    %752 = vmatpush1.msra.mxu0 0.0
    %753 = vmatprep.subr.mxu0 0.0
    %754 = vmatpush1.msra.mxu0 0.0
    %755 = vmatprep.subr.mxu0 0.0
    %756 = vmatpush1.msra.mxu0 0.0
    %757 = vmatprep.subr.mxu0 0.0
    %758 = vmatpush1.msra.mxu0 0.0
    %759 = vmatprep.subr.mxu0 0.0
    %760 = vmatpush1.msra.mxu0 0.0
    %761 = vmatprep.subr.mxu0 0.0
    %762 = vmatpush1.msra.mxu0 0.0
    %763 = vmatprep.subr.mxu0 0.0
    %764 = vmatpush1.msra.mxu0 0.0
    %765 = vmatprep.subr.mxu0 0.0
    %766 = vmatpush1.msra.mxu0 0.0
    %767 = vmatprep.subr.mxu0 0.0
    %768 = vmatpush1.msra.mxu0 0.0
    %769 = vmatprep.subr.mxu0 0.0
    %770 = vmatpush1.msra.mxu0 0.0
    %771 = vmatprep.subr.mxu0 0.0
    %772 = vmatpush1.msra.mxu0 0.0
    %773 = vmatprep.mubr.f32.mxu0 0.0
    %774 = vmatmul.mubr.f32.gmra.mrb[0].mxu0 %v704
    %v775 = vpop.f32.mrb[0].mxu0
    %v776 = vadd.f32 0.0, %v775
    %v777 = vpop.f32.mrb[0].mxu0
    %778 = vmatprep.mubr.f32.mxu0 0.0
    %779 = vmatmul.mubr.f32.gmra.mrb[0].mxu0 %v707
    %v780 = vpop.f32.mrb[0].mxu0
    %v781 = vadd.f32 0.0, %v780
    %v782 = vpop.f32.mrb[0].mxu0
    %783 = vdwg.mxu0
    %v784 = vadd.f32 %v691, %v776
    %v785 = vadd.f32 %v696, %v781
    %v786 = vld [vmem:[%s12] sm:$0x1]
    %v788 = vlaneseq
    %v789 = vshrl.u32 %v788, 7
    %v790 = vsub.s32 0, %v789
    %v791 = vrot.slane %v786, %v790
    %v793 = vadd.f32 %v784, %v791
    %v794 = vadd.f32 %v785, %v791
    %vm795 = vcmp.ge.f32.partialorder %v793, 0.0
    %vm796 = vcmp.ge.f32.partialorder %v794, 0.0
    %v797 = vmul.f32 %v793, 0.01
    %v798 = vmul.f32 %v794, 0.01
    %v799 = vsel %vm795, %v793, %v797
    %v800 = vsel %vm796, %v794, %v798
    %v801 = vadd.f32 %v799, %v128
    %v802 = vadd.f32 %v800, %v129
    %v803 = vld [vmem:[%s15] sm:$0xff]
    %v804 = vld [vmem:[%s15 + $0x8] sm:$0xff]
    %v805 = vld [vmem:[%s15 + $0x10] sm:$0xff]
    %v806 = vld [vmem:[%s15 + $0x18] sm:$0xff]
    %v807 = vld [vmem:[%s16] sm:$0x1]
    %v809 = vlaneseq
    %v810 = vshrl.u32 %v809, 7
    %v811 = vsub.s32 0, %v810
    %v812 = vrot.slane %v807, %v811
    %v815 = vsel %vm137, %v801, 0
    %v818 = vsel %vm137, %v802, 0
    %820 = vmatprep.subr.mxu0 0.0
    %821 = vmatpush1.msra.mxu0 %v803
    %822 = vmatprep.subr.mxu0 0.0
    %823 = vmatpush1.msra.mxu0 %v804
    %824 = vmatprep.subr.mxu0 0.0
    %825 = vmatpush1.msra.mxu0 %v805
    %826 = vmatprep.subr.mxu0 0.0
    %827 = vmatpush1.msra.mxu0 %v806
    %828 = vmatprep.subr.mxu0 0.0
    %829 = vmatpush1.msra.mxu0 0.0
    %830 = vmatprep.subr.mxu0 0.0
    %831 = vmatpush1.msra.mxu0 0.0
    %832 = vmatprep.subr.mxu0 0.0
    %833 = vmatpush1.msra.mxu0 0.0
    %834 = vmatprep.subr.mxu0 0.0
    %835 = vmatpush1.msra.mxu0 0.0
    %836 = vmatprep.subr.mxu0 0.0
    %837 = vmatpush1.msra.mxu0 0.0
    %838 = vmatprep.subr.mxu0 0.0
    %839 = vmatpush1.msra.mxu0 0.0
    %840 = vmatprep.subr.mxu0 0.0
    %841 = vmatpush1.msra.mxu0 0.0
    %842 = vmatprep.subr.mxu0 0.0
    %843 = vmatpush1.msra.mxu0 0.0
    %844 = vmatprep.subr.mxu0 0.0
    %845 = vmatpush1.msra.mxu0 0.0
    %846 = vmatprep.subr.mxu0 0.0
    %847 = vmatpush1.msra.mxu0 0.0
    %848 = vmatprep.subr.mxu0 0.0
    %849 = vmatpush1.msra.mxu0 0.0
    %850 = vmatprep.subr.mxu0 0.0
    %851 = vmatpush1.msra.mxu0 0.0
    %852 = vmatprep.subr.mxu0 0.0
    %853 = vmatpush1.msra.mxu0 0.0
    %854 = vmatprep.subr.mxu0 0.0
    %855 = vmatpush1.msra.mxu0 0.0
    %856 = vmatprep.subr.mxu0 0.0
    %857 = vmatpush1.msra.mxu0 0.0
    %858 = vmatprep.subr.mxu0 0.0
    %859 = vmatpush1.msra.mxu0 0.0
    %860 = vmatprep.subr.mxu0 0.0
    %861 = vmatpush1.msra.mxu0 0.0
    %862 = vmatprep.subr.mxu0 0.0
    %863 = vmatpush1.msra.mxu0 0.0
    %864 = vmatprep.subr.mxu0 0.0
    %865 = vmatpush1.msra.mxu0 0.0
    %866 = vmatprep.subr.mxu0 0.0
    %867 = vmatpush1.msra.mxu0 0.0
    %868 = vmatprep.subr.mxu0 0.0
    %869 = vmatpush1.msra.mxu0 0.0
    %870 = vmatprep.subr.mxu0 0.0
    %871 = vmatpush1.msra.mxu0 0.0
    %872 = vmatprep.subr.mxu0 0.0
    %873 = vmatpush1.msra.mxu0 0.0
    %874 = vmatprep.subr.mxu0 0.0
    %875 = vmatpush1.msra.mxu0 0.0
    %876 = vmatprep.subr.mxu0 0.0
    %877 = vmatpush1.msra.mxu0 0.0
    %878 = vmatprep.subr.mxu0 0.0
    %879 = vmatpush1.msra.mxu0 0.0
    %880 = vmatprep.subr.mxu0 0.0
    %881 = vmatpush1.msra.mxu0 0.0
    %882 = vmatprep.subr.mxu0 0.0
    %883 = vmatpush1.msra.mxu0 0.0
    %884 = vmatprep.mubr.f32.mxu0 0.0
    %885 = vmatmul.mubr.f32.gmra.mrb[0].mxu0 %v815
    %v886 = vpop.f32.mrb[0].mxu0
    %v887 = vadd.f32 %v812, %v886
    %v888 = vpop.f32.mrb[0].mxu0
    %889 = vmatprep.mubr.f32.mxu0 0.0
    %890 = vmatmul.mubr.f32.gmra.mrb[0].mxu0 %v818
    %v891 = vpop.f32.mrb[0].mxu0
    %v892 = vadd.f32 %v812, %v891
    %v893 = vpop.f32.mrb[0].mxu0
    %894 = vdwg.mxu0
    %vm895 = vcmp.ge.f32.partialorder %v887, 0.0
    %vm896 = vcmp.ge.f32.partialorder %v892, 0.0
    %v897 = vmul.f32 %v887, 0.01
    %v898 = vmul.f32 %v892, 0.01
    %v899 = vsel %vm895, %v887, %v897
    %v900 = vsel %vm896, %v892, %v898
    %v901 = vld [vmem:[%s13] sm:$0x1]
    %v902 = vld [vmem:[%s14] sm:$0x1]
    %904 = vset.pattern.permute.xlu0 0
    %905 = vperm.xlu0 %904, %v902
    %v906 = vpop.permute.xlu0 %905
    %v908 = vlaneseq
    %v909 = vshrl.u32 %v908, 7
    %v910 = vsub.s32 0, %v909
    %v911 = vrot.slane %v906, %v910
    %v913 = vsel %vm137, %v901, 0
    %915 = vmatprep.subr.mxu0 0.0
    %916 = vmatpush1.xpose.msra.mxu0 %v815
    %917 = vmatprep.subr.mxu0 0.0
    %918 = vmatpush1.xpose.msra.mxu0 %v818
    %919 = vmatprep.subr.mxu0 0.0
    %920 = vmatpush1.xpose.msra.mxu0 0.0
    %921 = vmatprep.subr.mxu0 0.0
    %922 = vmatpush1.xpose.msra.mxu0 0.0
    %923 = vmatprep.subr.mxu0 0.0
    %924 = vmatpush1.xpose.msra.mxu0 0.0
    %925 = vmatprep.subr.mxu0 0.0
    %926 = vmatpush1.xpose.msra.mxu0 0.0
    %927 = vmatprep.subr.mxu0 0.0
    %928 = vmatpush1.xpose.msra.mxu0 0.0
    %929 = vmatprep.subr.mxu0 0.0
    %930 = vmatpush1.xpose.msra.mxu0 0.0
    %931 = vmatprep.subr.mxu0 0.0
    %932 = vmatpush1.xpose.msra.mxu0 0.0
    %933 = vmatprep.subr.mxu0 0.0
    %934 = vmatpush1.xpose.msra.mxu0 0.0
    %935 = vmatprep.subr.mxu0 0.0
    %936 = vmatpush1.xpose.msra.mxu0 0.0
    %937 = vmatprep.subr.mxu0 0.0
    %938 = vmatpush1.xpose.msra.mxu0 0.0
    %939 = vmatprep.subr.mxu0 0.0
    %940 = vmatpush1.xpose.msra.mxu0 0.0
    %941 = vmatprep.subr.mxu0 0.0
    %942 = vmatpush1.xpose.msra.mxu0 0.0
    %943 = vmatprep.subr.mxu0 0.0
    %944 = vmatpush1.xpose.msra.mxu0 0.0
    %945 = vmatprep.subr.mxu0 0.0
    %946 = vmatpush1.xpose.msra.mxu0 0.0
    %947 = vmatprep.subr.mxu0 0.0
    %948 = vmatpush1.xpose.msra.mxu0 0.0
    %949 = vmatprep.subr.mxu0 0.0
    %950 = vmatpush1.xpose.msra.mxu0 0.0
    %951 = vmatprep.subr.mxu0 0.0
    %952 = vmatpush1.xpose.msra.mxu0 0.0
    %953 = vmatprep.subr.mxu0 0.0
    %954 = vmatpush1.xpose.msra.mxu0 0.0
    %955 = vmatprep.subr.mxu0 0.0
    %956 = vmatpush1.xpose.msra.mxu0 0.0
    %957 = vmatprep.subr.mxu0 0.0
    %958 = vmatpush1.xpose.msra.mxu0 0.0
    %959 = vmatprep.subr.mxu0 0.0
    %960 = vmatpush1.xpose.msra.mxu0 0.0
    %961 = vmatprep.subr.mxu0 0.0
    %962 = vmatpush1.xpose.msra.mxu0 0.0
    %963 = vmatprep.subr.mxu0 0.0
    %964 = vmatpush1.xpose.msra.mxu0 0.0
    %965 = vmatprep.subr.mxu0 0.0
    %966 = vmatpush1.xpose.msra.mxu0 0.0
    %967 = vmatprep.subr.mxu0 0.0
    %968 = vmatpush1.xpose.msra.mxu0 0.0
    %969 = vmatprep.subr.mxu0 0.0
    %970 = vmatpush1.xpose.msra.mxu0 0.0
    %971 = vmatprep.subr.mxu0 0.0
    %972 = vmatpush1.xpose.msra.mxu0 0.0
    %973 = vmatprep.subr.mxu0 0.0
    %974 = vmatpush1.xpose.msra.mxu0 0.0
    %975 = vmatprep.subr.mxu0 0.0
    %976 = vmatpush1.xpose.msra.mxu0 0.0
    %977 = vmatprep.subr.mxu0 0.0
    %978 = vmatpush1.xpose.msra.mxu0 0.0
    %979 = vmatprep.mubr.f32.mxu0 0.0
    %980 = vmatmul.mubr.f32.gmra.mrb[0].mxu0 %v913
    %v981 = vpop.f32.mrb[0].mxu0
    %v982 = vadd.f32 %v911, %v981
    %v983 = vpop.f32.mrb[0].mxu0
    %984 = vdwg.mxu0
    %v985 = vlaneseq
    %v986 = vshrl.u32 %v985, 7
    %v987 = vsub.s32 0, %v986
    %v988 = vrot.slane %v982, %v987
    %v989 = vsel %vm112, %v988, -1e+30
    %vm990 = vcmask 91136
    %v991 = vsel %vm990, %v989, -inf
    %992 = vmax.xlane.f32.xlu0 %v991
    %v993 = vpop.xlane.xlu0 %992
    %v994 = vsub.f32 %v988, %v993
    %v995 = vsel %vm112, %v994, -100.0
    %v996 = vmul.f32 %v995, 1.442695
    %v997 = vpow.pop %v996
    %v998 = vsel %vm112, %v997, 0.0
    %v999 = vsel %vm990, %v998, 0.0
    %1000 = vadd.xlane.f32.xlu0 %v999
    %v1001 = vpop.xlane.xlu0 %1000
    %v1002 = vmax.f32 %v1001, 1e-30
    %v1003 = vrcp.pop %v1002
    %v1004 = vmul.f32 %v998, %v1003
    %v1006 = vsel %vm311, %v1004, 0
    %v1009 = vsel %vm321, %v900, 0
    %1011 = vmatprep.subr.mxu0 0.0
    %1012 = vmatpush1.msra.mxu0 %v899
    %1013 = vmatprep.subr.mxu0 0.0
    %1014 = vmatpush1.msra.mxu0 %v1009
    %1015 = vmatprep.subr.mxu0 0.0
    %1016 = vmatpush1.msra.mxu0 0.0
    %1017 = vmatprep.subr.mxu0 0.0
    %1018 = vmatpush1.msra.mxu0 0.0
    %1019 = vmatprep.subr.mxu0 0.0
    %1020 = vmatpush1.msra.mxu0 0.0
    %1021 = vmatprep.subr.mxu0 0.0
    %1022 = vmatpush1.msra.mxu0 0.0
    %1023 = vmatprep.subr.mxu0 0.0
    %1024 = vmatpush1.msra.mxu0 0.0
    %1025 = vmatprep.subr.mxu0 0.0
    %1026 = vmatpush1.msra.mxu0 0.0
    %1027 = vmatprep.subr.mxu0 0.0
    %1028 = vmatpush1.msra.mxu0 0.0
    %1029 = vmatprep.subr.mxu0 0.0
    %1030 = vmatpush1.msra.mxu0 0.0
    %1031 = vmatprep.subr.mxu0 0.0
    %1032 = vmatpush1.msra.mxu0 0.0
    %1033 = vmatprep.subr.mxu0 0.0
    %1034 = vmatpush1.msra.mxu0 0.0
    %1035 = vmatprep.subr.mxu0 0.0
    %1036 = vmatpush1.msra.mxu0 0.0
    %1037 = vmatprep.subr.mxu0 0.0
    %1038 = vmatpush1.msra.mxu0 0.0
    %1039 = vmatprep.subr.mxu0 0.0
    %1040 = vmatpush1.msra.mxu0 0.0
    %1041 = vmatprep.subr.mxu0 0.0
    %1042 = vmatpush1.msra.mxu0 0.0
    %1043 = vmatprep.subr.mxu0 0.0
    %1044 = vmatpush1.msra.mxu0 0.0
    %1045 = vmatprep.subr.mxu0 0.0
    %1046 = vmatpush1.msra.mxu0 0.0
    %1047 = vmatprep.subr.mxu0 0.0
    %1048 = vmatpush1.msra.mxu0 0.0
    %1049 = vmatprep.subr.mxu0 0.0
    %1050 = vmatpush1.msra.mxu0 0.0
    %1051 = vmatprep.subr.mxu0 0.0
    %1052 = vmatpush1.msra.mxu0 0.0
    %1053 = vmatprep.subr.mxu0 0.0
    %1054 = vmatpush1.msra.mxu0 0.0
    %1055 = vmatprep.subr.mxu0 0.0
    %1056 = vmatpush1.msra.mxu0 0.0
    %1057 = vmatprep.subr.mxu0 0.0
    %1058 = vmatpush1.msra.mxu0 0.0
    %1059 = vmatprep.subr.mxu0 0.0
    %1060 = vmatpush1.msra.mxu0 0.0
    %1061 = vmatprep.subr.mxu0 0.0
    %1062 = vmatpush1.msra.mxu0 0.0
    %1063 = vmatprep.subr.mxu0 0.0
    %1064 = vmatpush1.msra.mxu0 0.0
    %1065 = vmatprep.subr.mxu0 0.0
    %1066 = vmatpush1.msra.mxu0 0.0
    %1067 = vmatprep.subr.mxu0 0.0
    %1068 = vmatpush1.msra.mxu0 0.0
    %1069 = vmatprep.subr.mxu0 0.0
    %1070 = vmatpush1.msra.mxu0 0.0
    %1071 = vmatprep.subr.mxu0 0.0
    %1072 = vmatpush1.msra.mxu0 0.0
    %1073 = vmatprep.subr.mxu0 0.0
    %1074 = vmatpush1.msra.mxu0 0.0
    %1075 = vmatprep.mubr.f32.mxu0 0.0
    %1076 = vmatmul.mubr.f32.gmra.mrb[0].mxu0 %v1006
    %v1077 = vpop.f32.mrb[0].mxu0
    %v1078 = vadd.f32 0.0, %v1077
    %v1079 = vpop.f32.mrb[0].mxu0
    %1080 = vdwg.mxu0
    %v1081 = vld [vmem:[%s17] sm:$0xff]
    %v1082 = vld [vmem:[%s17 + $0x8] sm:$0xff]
    %v1083 = vld [vmem:[%s17 + $0x10] sm:$0xff]
    %v1084 = vld [vmem:[%s17 + $0x18] sm:$0xff]
    %v1085 = vld [vmem:[%s18] sm:$0xff]
    %v1086 = vld [vmem:[%s18 + $0x8] sm:$0xff]
    %v1087 = vld [vmem:[%s18 + $0x10] sm:$0xff]
    %v1088 = vld [vmem:[%s18 + $0x18] sm:$0xff]
    %1089 = vmatprep.subr.mxu0 0.0
    %1090 = vmatpush1.msra.mxu0 %v1085
    %1091 = vmatprep.subr.mxu0 0.0
    %1092 = vmatpush1.msra.mxu0 %v1086
    %1093 = vmatprep.subr.mxu0 0.0
    %1094 = vmatpush1.msra.mxu0 %v1087
    %1095 = vmatprep.subr.mxu0 0.0
    %1096 = vmatpush1.msra.mxu0 %v1088
    %1097 = vmatprep.subr.mxu0 0.0
    %1098 = vmatpush1.msra.mxu0 0.0
    %1099 = vmatprep.subr.mxu0 0.0
    %1100 = vmatpush1.msra.mxu0 0.0
    %1101 = vmatprep.subr.mxu0 0.0
    %1102 = vmatpush1.msra.mxu0 0.0
    %1103 = vmatprep.subr.mxu0 0.0
    %1104 = vmatpush1.msra.mxu0 0.0
    %1105 = vmatprep.subr.mxu0 0.0
    %1106 = vmatpush1.msra.mxu0 0.0
    %1107 = vmatprep.subr.mxu0 0.0
    %1108 = vmatpush1.msra.mxu0 0.0
    %1109 = vmatprep.subr.mxu0 0.0
    %1110 = vmatpush1.msra.mxu0 0.0
    %1111 = vmatprep.subr.mxu0 0.0
    %1112 = vmatpush1.msra.mxu0 0.0
    %1113 = vmatprep.subr.mxu0 0.0
    %1114 = vmatpush1.msra.mxu0 0.0
    %1115 = vmatprep.subr.mxu0 0.0
    %1116 = vmatpush1.msra.mxu0 0.0
    %1117 = vmatprep.subr.mxu0 0.0
    %1118 = vmatpush1.msra.mxu0 0.0
    %1119 = vmatprep.subr.mxu0 0.0
    %1120 = vmatpush1.msra.mxu0 0.0
    %1121 = vmatprep.subr.mxu0 0.0
    %1122 = vmatpush1.msra.mxu0 0.0
    %1123 = vmatprep.subr.mxu0 0.0
    %1124 = vmatpush1.msra.mxu0 0.0
    %1125 = vmatprep.subr.mxu0 0.0
    %1126 = vmatpush1.msra.mxu0 0.0
    %1127 = vmatprep.subr.mxu0 0.0
    %1128 = vmatpush1.msra.mxu0 0.0
    %1129 = vmatprep.subr.mxu0 0.0
    %1130 = vmatpush1.msra.mxu0 0.0
    %1131 = vmatprep.subr.mxu0 0.0
    %1132 = vmatpush1.msra.mxu0 0.0
    %1133 = vmatprep.subr.mxu0 0.0
    %1134 = vmatpush1.msra.mxu0 0.0
    %1135 = vmatprep.subr.mxu0 0.0
    %1136 = vmatpush1.msra.mxu0 0.0
    %1137 = vmatprep.subr.mxu0 0.0
    %1138 = vmatpush1.msra.mxu0 0.0
    %1139 = vmatprep.subr.mxu0 0.0
    %1140 = vmatpush1.msra.mxu0 0.0
    %1141 = vmatprep.subr.mxu0 0.0
    %1142 = vmatpush1.msra.mxu0 0.0
    %1143 = vmatprep.subr.mxu0 0.0
    %1144 = vmatpush1.msra.mxu0 0.0
    %1145 = vmatprep.subr.mxu0 0.0
    %1146 = vmatpush1.msra.mxu0 0.0
    %1147 = vmatprep.subr.mxu0 0.0
    %1148 = vmatpush1.msra.mxu0 0.0
    %1149 = vmatprep.subr.mxu0 0.0
    %1150 = vmatpush1.msra.mxu0 0.0
    %1151 = vmatprep.subr.mxu0 0.0
    %1152 = vmatpush1.msra.mxu0 0.0
    %1153 = vmatprep.mubr.f32.mxu0 0.0
    %1154 = vmatmul.mubr.f32.gmra.mrb[0].mxu0 %v462
    %v1155 = vpop.f32.mrb[0].mxu0
    %v1156 = vadd.f32 0.0, %v1155
    %v1157 = vpop.f32.mrb[0].mxu0
    %1158 = vdwg.mxu0
    %v1160 = vsel %vm137, %v1078, 0
    %1162 = vmatprep.subr.mxu0 0.0
    %1163 = vmatpush1.msra.mxu0 %v1081
    %1164 = vmatprep.subr.mxu0 0.0
    %1165 = vmatpush1.msra.mxu0 %v1082
    %1166 = vmatprep.subr.mxu0 0.0
    %1167 = vmatpush1.msra.mxu0 %v1083
    %1168 = vmatprep.subr.mxu0 0.0
    %1169 = vmatpush1.msra.mxu0 %v1084
    %1170 = vmatprep.subr.mxu0 0.0
    %1171 = vmatpush1.msra.mxu0 0.0
    %1172 = vmatprep.subr.mxu0 0.0
    %1173 = vmatpush1.msra.mxu0 0.0
    %1174 = vmatprep.subr.mxu0 0.0
    %1175 = vmatpush1.msra.mxu0 0.0
    %1176 = vmatprep.subr.mxu0 0.0
    %1177 = vmatpush1.msra.mxu0 0.0
    %1178 = vmatprep.subr.mxu0 0.0
    %1179 = vmatpush1.msra.mxu0 0.0
    %1180 = vmatprep.subr.mxu0 0.0
    %1181 = vmatpush1.msra.mxu0 0.0
    %1182 = vmatprep.subr.mxu0 0.0
    %1183 = vmatpush1.msra.mxu0 0.0
    %1184 = vmatprep.subr.mxu0 0.0
    %1185 = vmatpush1.msra.mxu0 0.0
    %1186 = vmatprep.subr.mxu0 0.0
    %1187 = vmatpush1.msra.mxu0 0.0
    %1188 = vmatprep.subr.mxu0 0.0
    %1189 = vmatpush1.msra.mxu0 0.0
    %1190 = vmatprep.subr.mxu0 0.0
    %1191 = vmatpush1.msra.mxu0 0.0
    %1192 = vmatprep.subr.mxu0 0.0
    %1193 = vmatpush1.msra.mxu0 0.0
    %1194 = vmatprep.subr.mxu0 0.0
    %1195 = vmatpush1.msra.mxu0 0.0
    %1196 = vmatprep.subr.mxu0 0.0
    %1197 = vmatpush1.msra.mxu0 0.0
    %1198 = vmatprep.subr.mxu0 0.0
    %1199 = vmatpush1.msra.mxu0 0.0
    %1200 = vmatprep.subr.mxu0 0.0
    %1201 = vmatpush1.msra.mxu0 0.0
    %1202 = vmatprep.subr.mxu0 0.0
    %1203 = vmatpush1.msra.mxu0 0.0
    %1204 = vmatprep.subr.mxu0 0.0
    %1205 = vmatpush1.msra.mxu0 0.0
    %1206 = vmatprep.subr.mxu0 0.0
    %1207 = vmatpush1.msra.mxu0 0.0
    %1208 = vmatprep.subr.mxu0 0.0
    %1209 = vmatpush1.msra.mxu0 0.0
    %1210 = vmatprep.subr.mxu0 0.0
    %1211 = vmatpush1.msra.mxu0 0.0
    %1212 = vmatprep.subr.mxu0 0.0
    %1213 = vmatpush1.msra.mxu0 0.0
    %1214 = vmatprep.subr.mxu0 0.0
    %1215 = vmatpush1.msra.mxu0 0.0
    %1216 = vmatprep.subr.mxu0 0.0
    %1217 = vmatpush1.msra.mxu0 0.0
    %1218 = vmatprep.subr.mxu0 0.0
    %1219 = vmatpush1.msra.mxu0 0.0
    %1220 = vmatprep.subr.mxu0 0.0
    %1221 = vmatpush1.msra.mxu0 0.0
    %1222 = vmatprep.subr.mxu0 0.0
    %1223 = vmatpush1.msra.mxu0 0.0
    %1224 = vmatprep.subr.mxu0 0.0
    %1225 = vmatpush1.msra.mxu0 0.0
    %1226 = vmatprep.mubr.f32.mxu0 0.0
    %1227 = vmatmul.mubr.f32.gmra.mrb[0].mxu0 %v1160
    %v1228 = vpop.f32.mrb[0].mxu0
    %v1229 = vadd.f32 %v1156, %v1228
    %v1230 = vpop.f32.mrb[0].mxu0
    %1231 = vdwg.mxu0
    %v1232 = vld [vmem:[%s19] sm:$0x1]
    %v1234 = vlaneseq
    %v1235 = vshrl.u32 %v1234, 7
    %v1236 = vsub.s32 0, %v1235
    %v1237 = vrot.slane %v1232, %v1236
    %v1239 = vadd.f32 %v1229, %v1237
    %vm1240 = vcmp.ge.f32.partialorder %v1239, 0.0
    %v1241 = vmul.f32 %v1239, 0.01
    %v1242 = vsel %vm1240, %v1239, %v1241
    %v1243 = vadd.f32 %v1242, 0.0
    %s1244 = scalar_lea.vmem %s6, 32
    %v1245 = vld [vmem:[%s1244] sm:$0xff]
    %v1246 = vld [vmem:[%s1244 + $0x8] sm:$0xff]
    %v1247 = vld [vmem:[%s1244 + $0x10] sm:$0xff]
    %v1248 = vld [vmem:[%s1244 + $0x18] sm:$0xff]
    %1249 = vmatprep.subr.mxu0 0.0
    %1250 = vmatpush1.msra.mxu0 %v1245
    %1251 = vmatprep.subr.mxu0 0.0
    %1252 = vmatpush1.msra.mxu0 %v1246
    %1253 = vmatprep.subr.mxu0 0.0
    %1254 = vmatpush1.msra.mxu0 %v1247
    %1255 = vmatprep.subr.mxu0 0.0
    %1256 = vmatpush1.msra.mxu0 %v1248
    %1257 = vmatprep.subr.mxu0 0.0
    %1258 = vmatpush1.msra.mxu0 0.0
    %1259 = vmatprep.subr.mxu0 0.0
    %1260 = vmatpush1.msra.mxu0 0.0
    %1261 = vmatprep.subr.mxu0 0.0
    %1262 = vmatpush1.msra.mxu0 0.0
    %1263 = vmatprep.subr.mxu0 0.0
    %1264 = vmatpush1.msra.mxu0 0.0
    %1265 = vmatprep.subr.mxu0 0.0
    %1266 = vmatpush1.msra.mxu0 0.0
    %1267 = vmatprep.subr.mxu0 0.0
    %1268 = vmatpush1.msra.mxu0 0.0
    %1269 = vmatprep.subr.mxu0 0.0
    %1270 = vmatpush1.msra.mxu0 0.0
    %1271 = vmatprep.subr.mxu0 0.0
    %1272 = vmatpush1.msra.mxu0 0.0
    %1273 = vmatprep.subr.mxu0 0.0
    %1274 = vmatpush1.msra.mxu0 0.0
    %1275 = vmatprep.subr.mxu0 0.0
    %1276 = vmatpush1.msra.mxu0 0.0
    %1277 = vmatprep.subr.mxu0 0.0
    %1278 = vmatpush1.msra.mxu0 0.0
    %1279 = vmatprep.subr.mxu0 0.0
    %1280 = vmatpush1.msra.mxu0 0.0
    %1281 = vmatprep.subr.mxu0 0.0
    %1282 = vmatpush1.msra.mxu0 0.0
    %1283 = vmatprep.subr.mxu0 0.0
    %1284 = vmatpush1.msra.mxu0 0.0
    %1285 = vmatprep.subr.mxu0 0.0
    %1286 = vmatpush1.msra.mxu0 0.0
    %1287 = vmatprep.subr.mxu0 0.0
    %1288 = vmatpush1.msra.mxu0 0.0
    %1289 = vmatprep.subr.mxu0 0.0
    %1290 = vmatpush1.msra.mxu0 0.0
    %1291 = vmatprep.subr.mxu0 0.0
    %1292 = vmatpush1.msra.mxu0 0.0
    %1293 = vmatprep.subr.mxu0 0.0
    %1294 = vmatpush1.msra.mxu0 0.0
    %1295 = vmatprep.subr.mxu0 0.0
    %1296 = vmatpush1.msra.mxu0 0.0
    %1297 = vmatprep.subr.mxu0 0.0
    %1298 = vmatpush1.msra.mxu0 0.0
    %1299 = vmatprep.subr.mxu0 0.0
    %1300 = vmatpush1.msra.mxu0 0.0
    %1301 = vmatprep.subr.mxu0 0.0
    %1302 = vmatpush1.msra.mxu0 0.0
    %1303 = vmatprep.subr.mxu0 0.0
    %1304 = vmatpush1.msra.mxu0 0.0
    %1305 = vmatprep.subr.mxu0 0.0
    %1306 = vmatpush1.msra.mxu0 0.0
    %1307 = vmatprep.subr.mxu0 0.0
    %1308 = vmatpush1.msra.mxu0 0.0
    %1309 = vmatprep.subr.mxu0 0.0
    %1310 = vmatpush1.msra.mxu0 0.0
    %1311 = vmatprep.subr.mxu0 0.0
    %1312 = vmatpush1.msra.mxu0 0.0
    %1313 = vmatprep.mubr.f32.mxu0 0.0
    %1314 = vmatmul.mubr.f32.gmra.mrb[0].mxu0 %v815
    %v1315 = vpop.f32.mrb[0].mxu0
    %v1316 = vadd.f32 0.0, %v1315
    %v1317 = vpop.f32.mrb[0].mxu0
    %1318 = vmatprep.mubr.f32.mxu0 0.0
    %1319 = vmatmul.mubr.f32.gmra.mrb[0].mxu0 %v818
    %v1320 = vpop.f32.mrb[0].mxu0
    %v1321 = vadd.f32 0.0, %v1320
    %v1322 = vpop.f32.mrb[0].mxu0
    %1323 = vdwg.mxu0
    %s1324 = scalar_lea.vmem %s7, 16
    %v1325 = vld [vmem:[%s1324] sm:$0xff]
    %v1326 = vld [vmem:[%s1324 + $0x8] sm:$0xff]
    %1327 = vmatprep.subr.mxu0 0.0
    %1328 = vmatpush1.msra.mxu0 %v1325
    %1329 = vmatprep.subr.mxu0 0.0
    %1330 = vmatpush1.msra.mxu0 %v1326
    %1331 = vmatprep.subr.mxu0 0.0
    %1332 = vmatpush1.msra.mxu0 0.0
    %1333 = vmatprep.subr.mxu0 0.0
    %1334 = vmatpush1.msra.mxu0 0.0
    %1335 = vmatprep.subr.mxu0 0.0
    %1336 = vmatpush1.msra.mxu0 0.0
    %1337 = vmatprep.subr.mxu0 0.0
    %1338 = vmatpush1.msra.mxu0 0.0
    %1339 = vmatprep.subr.mxu0 0.0
    %1340 = vmatpush1.msra.mxu0 0.0
    %1341 = vmatprep.subr.mxu0 0.0
    %1342 = vmatpush1.msra.mxu0 0.0
    %1343 = vmatprep.subr.mxu0 0.0
    %1344 = vmatpush1.msra.mxu0 0.0
    %1345 = vmatprep.subr.mxu0 0.0
    %1346 = vmatpush1.msra.mxu0 0.0
    %1347 = vmatprep.subr.mxu0 0.0
    %1348 = vmatpush1.msra.mxu0 0.0
    %1349 = vmatprep.subr.mxu0 0.0
    %1350 = vmatpush1.msra.mxu0 0.0
    %1351 = vmatprep.subr.mxu0 0.0
    %1352 = vmatpush1.msra.mxu0 0.0
    %1353 = vmatprep.subr.mxu0 0.0
    %1354 = vmatpush1.msra.mxu0 0.0
    %1355 = vmatprep.subr.mxu0 0.0
    %1356 = vmatpush1.msra.mxu0 0.0
    %1357 = vmatprep.subr.mxu0 0.0
    %1358 = vmatpush1.msra.mxu0 0.0
    %1359 = vmatprep.subr.mxu0 0.0
    %1360 = vmatpush1.msra.mxu0 0.0
    %1361 = vmatprep.subr.mxu0 0.0
    %1362 = vmatpush1.msra.mxu0 0.0
    %1363 = vmatprep.subr.mxu0 0.0
    %1364 = vmatpush1.msra.mxu0 0.0
    %1365 = vmatprep.subr.mxu0 0.0
    %1366 = vmatpush1.msra.mxu0 0.0
    %1367 = vmatprep.subr.mxu0 0.0
    %1368 = vmatpush1.msra.mxu0 0.0
    %1369 = vmatprep.subr.mxu0 0.0
    %1370 = vmatpush1.msra.mxu0 0.0
    %1371 = vmatprep.subr.mxu0 0.0
    %1372 = vmatpush1.msra.mxu0 0.0
    %1373 = vmatprep.subr.mxu0 0.0
    %1374 = vmatpush1.msra.mxu0 0.0
    %1375 = vmatprep.subr.mxu0 0.0
    %1376 = vmatpush1.msra.mxu0 0.0
    %1377 = vmatprep.subr.mxu0 0.0
    %1378 = vmatpush1.msra.mxu0 0.0
    %1379 = vmatprep.subr.mxu0 0.0
    %1380 = vmatpush1.msra.mxu0 0.0
    %1381 = vmatprep.subr.mxu0 0.0
    %1382 = vmatpush1.msra.mxu0 0.0
    %1383 = vmatprep.subr.mxu0 0.0
    %1384 = vmatpush1.msra.mxu0 0.0
    %1385 = vmatprep.subr.mxu0 0.0
    %1386 = vmatpush1.msra.mxu0 0.0
    %1387 = vmatprep.subr.mxu0 0.0
    %1388 = vmatpush1.msra.mxu0 0.0
    %1389 = vmatprep.subr.mxu0 0.0
    %1390 = vmatpush1.msra.mxu0 0.0
    %1391 = vmatprep.mubr.f32.mxu0 0.0
    %1392 = vmatmul.mubr.f32.gmra.mrb[0].mxu0 %v223
    %v1393 = vpop.f32.mrb[0].mxu0
    %v1394 = vadd.f32 0.0, %v1393
    %v1395 = vpop.f32.mrb[0].mxu0
    %1396 = vmatprep.mubr.f32.mxu0 0.0
    %1397 = vmatmul.mubr.f32.gmra.mrb[0].mxu0 %v226
    %v1398 = vpop.f32.mrb[0].mxu0
    %v1399 = vadd.f32 0.0, %v1398
    %v1400 = vpop.f32.mrb[0].mxu0
    %1401 = vmatprep.mubr.f32.mxu0 0.0
    %1402 = vmatmul.mubr.f32.gmra.mrb[0].mxu0 %v229
    %v1403 = vpop.f32.mrb[0].mxu0
    %v1404 = vadd.f32 0.0, %v1403
    %v1405 = vpop.f32.mrb[0].mxu0
    %1406 = vdwg.mxu0
    %v1408 = vsel %vm321, %v1321, 0
    %1410 = vmatprep.subr.mxu0 0.0
    %1411 = vmatpush1.msra.mxu0 %v1316
    %1412 = vmatprep.subr.mxu0 0.0
    %1413 = vmatpush1.msra.mxu0 %v1408
    %1414 = vmatprep.subr.mxu0 0.0
    %1415 = vmatpush1.msra.mxu0 0.0
    %1416 = vmatprep.subr.mxu0 0.0
    %1417 = vmatpush1.msra.mxu0 0.0
    %1418 = vmatprep.subr.mxu0 0.0
    %1419 = vmatpush1.msra.mxu0 0.0
    %1420 = vmatprep.subr.mxu0 0.0
    %1421 = vmatpush1.msra.mxu0 0.0
    %1422 = vmatprep.subr.mxu0 0.0
    %1423 = vmatpush1.msra.mxu0 0.0
    %1424 = vmatprep.subr.mxu0 0.0
    %1425 = vmatpush1.msra.mxu0 0.0
    %1426 = vmatprep.subr.mxu0 0.0
    %1427 = vmatpush1.msra.mxu0 0.0
    %1428 = vmatprep.subr.mxu0 0.0
    %1429 = vmatpush1.msra.mxu0 0.0
    %1430 = vmatprep.subr.mxu0 0.0
    %1431 = vmatpush1.msra.mxu0 0.0
    %1432 = vmatprep.subr.mxu0 0.0
    %1433 = vmatpush1.msra.mxu0 0.0
    %1434 = vmatprep.subr.mxu0 0.0
    %1435 = vmatpush1.msra.mxu0 0.0
    %1436 = vmatprep.subr.mxu0 0.0
    %1437 = vmatpush1.msra.mxu0 0.0
    %1438 = vmatprep.subr.mxu0 0.0
    %1439 = vmatpush1.msra.mxu0 0.0
    %1440 = vmatprep.subr.mxu0 0.0
    %1441 = vmatpush1.msra.mxu0 0.0
    %1442 = vmatprep.subr.mxu0 0.0
    %1443 = vmatpush1.msra.mxu0 0.0
    %1444 = vmatprep.subr.mxu0 0.0
    %1445 = vmatpush1.msra.mxu0 0.0
    %1446 = vmatprep.subr.mxu0 0.0
    %1447 = vmatpush1.msra.mxu0 0.0
    %1448 = vmatprep.subr.mxu0 0.0
    %1449 = vmatpush1.msra.mxu0 0.0
    %1450 = vmatprep.subr.mxu0 0.0
    %1451 = vmatpush1.msra.mxu0 0.0
    %1452 = vmatprep.subr.mxu0 0.0
    %1453 = vmatpush1.msra.mxu0 0.0
    %1454 = vmatprep.subr.mxu0 0.0
    %1455 = vmatpush1.msra.mxu0 0.0
    %1456 = vmatprep.subr.mxu0 0.0
    %1457 = vmatpush1.msra.mxu0 0.0
    %1458 = vmatprep.subr.mxu0 0.0
    %1459 = vmatpush1.msra.mxu0 0.0
    %1460 = vmatprep.subr.mxu0 0.0
    %1461 = vmatpush1.msra.mxu0 0.0
    %1462 = vmatprep.subr.mxu0 0.0
    %1463 = vmatpush1.msra.mxu0 0.0
    %1464 = vmatprep.subr.mxu0 0.0
    %1465 = vmatpush1.msra.mxu0 0.0
    %1466 = vmatprep.subr.mxu0 0.0
    %1467 = vmatpush1.msra.mxu0 0.0
    %1468 = vmatprep.subr.mxu0 0.0
    %1469 = vmatpush1.msra.mxu0 0.0
    %1470 = vmatprep.subr.mxu0 0.0
    %1471 = vmatpush1.msra.mxu0 0.0
    %1472 = vmatprep.subr.mxu0 0.0
    %1473 = vmatpush1.msra.mxu0 0.0
    %1474 = vmatprep.mubr.f32.mxu0 0.0
    %1475 = vmatmul.mubr.f32.gmra.mrb[0].mxu0 %v313
    %v1476 = vpop.f32.mrb[0].mxu0
    %v1477 = vadd.f32 %v1394, %v1476
    %v1478 = vpop.f32.mrb[0].mxu0
    %1479 = vmatprep.mubr.f32.mxu0 0.0
    %1480 = vmatmul.mubr.f32.gmra.mrb[0].mxu0 %v316
    %v1481 = vpop.f32.mrb[0].mxu0
    %v1482 = vadd.f32 %v1399, %v1481
    %v1483 = vpop.f32.mrb[0].mxu0
    %1484 = vmatprep.mubr.f32.mxu0 0.0
    %1485 = vmatmul.mubr.f32.gmra.mrb[0].mxu0 %v319
    %v1486 = vpop.f32.mrb[0].mxu0
    %v1487 = vadd.f32 %v1404, %v1486
    %v1488 = vpop.f32.mrb[0].mxu0
    %1489 = vdwg.mxu0
    %s1490 = scalar_lea.vmem %s8, 1
    %v1491 = vld [vmem:[%s1490] sm:$0x1]
    %v1493 = vlaneseq
    %v1494 = vshrl.u32 %v1493, 7
    %v1495 = vsub.s32 0, %v1494
    %v1496 = vrot.slane %v1491, %v1495
    %v1498 = vadd.f32 %v1477, %v1496
    %v1499 = vadd.f32 %v1482, %v1496
    %v1500 = vadd.f32 %v1487, %v1496
    %vm1501 = vcmp.ge.f32.partialorder %v1498, 0.0
    %vm1502 = vcmp.ge.f32.partialorder %v1499, 0.0
    %vm1503 = vcmp.ge.f32.partialorder %v1500, 0.0
    %v1504 = vmul.f32 %v1498, 0.01
    %v1505 = vmul.f32 %v1499, 0.01
    %v1506 = vmul.f32 %v1500, 0.01
    %v1507 = vsel %vm1501, %v1498, %v1504
    %v1508 = vsel %vm1502, %v1499, %v1505
    %v1509 = vsel %vm1503, %v1500, %v1506
    %1510 = vst.msk [vmem:[#allocation2] sm:$0xff] %vm137, %v1507
    %1511 = vst.msk [vmem:[#allocation2 + $0x8] sm:$0xff] %vm137, %v1508
    %1512 = vst.msk [vmem:[#allocation2 + $0x10] sm:$0xff] %vm137, %v1509
    loop: start=0, step=1, limit=24
    $region93: #{pallas_forward.1} parent=1 // loop_pre_header
      _
    $region94: #{pallas_forward.1} parent=1 // loop_header
      %s1514 = sphi 0, %s1518
      %p1515 = scmp.ge.s32.totalorder %s1514, 24
      %v1519 = vphi -1e+30, %v1537
      %v1520 = vphi -1e+30, %v1538
    $region95: #{pallas_forward.1} parent=1 // loop_header_branch
      %1517 = sbr.rel (%p1515) target = $region99
    $region96: #{pallas_forward.1} parent=1 // loop_body
      %s1521 = sld [smem:[#allocation3 + %s1514]]
      %s1522 = scalar_lea.vmem [#allocation2], %s1514
      %v1523 = vld [vmem:[%s1522] sm:$0x1]
      %v1524 = vstv %s1521
      %vm1525 = vcmp.eq.s32.totalorder %v106, %v1524
      %vm1526 = vcmp.eq.s32.totalorder %v127, %v1524
      %v1527 = vsel %vm1525, 1, 0
      %v1528 = vsel %vm1526, 1, 0
      %vm1529 = vcmp.eq.s32.totalorder %v1527, 1
      %vm1530 = vcmp.eq.s32.totalorder %v1528, 1
      %v1531 = vlaneseq
      %v1532 = vshrl.u32 %v1531, 7
      %v1533 = vsub.s32 0, %v1532
      %v1534 = vrot.slane %v1523, %v1533
      %v1535 = vsel %vm1529, %v1534, -1e+30
      %v1536 = vsel %vm1530, %v1534, -1e+30
      %v1537 = vmax.f32 %v1519, %v1535
      %v1538 = vmax.f32 %v1520, %v1536
    $region97: #{pallas_forward.1} parent=1 // loop_footer
      %s1518 = sadd.s32 1, %s1514
    $region98: #{pallas_forward.1} parent=1 // loop_footer_branch
      %1513 = sbr.rel target = $region94
    $region99: #{pallas_forward.1} parent=1 // loop_exit
      _
    %vm1539 = vcmp.gt.f32.partialorder %v1519, -5e+29
    %vm1540 = vcmp.gt.f32.partialorder %v1520, -5e+29
    %v1541 = vsel %vm1539, %v1519, 0.0
    %v1542 = vsel %vm1540, %v1520, 0.0
    %s1543 = scalar_lea.vmem %s10, 32
    %v1544 = vld [vmem:[%s1543] sm:$0xff]
    %v1545 = vld [vmem:[%s1543 + $0x8] sm:$0xff]
    %v1546 = vld [vmem:[%s1543 + $0x10] sm:$0xff]
    %v1547 = vld [vmem:[%s1543 + $0x18] sm:$0xff]
    %v1549 = vsel %vm137, %v1243, 0
    %1551 = vmatprep.subr.mxu0 0.0
    %1552 = vmatpush1.msra.mxu0 %v1544
    %1553 = vmatprep.subr.mxu0 0.0
    %1554 = vmatpush1.msra.mxu0 %v1545
    %1555 = vmatprep.subr.mxu0 0.0
    %1556 = vmatpush1.msra.mxu0 %v1546
    %1557 = vmatprep.subr.mxu0 0.0
    %1558 = vmatpush1.msra.mxu0 %v1547
    %1559 = vmatprep.subr.mxu0 0.0
    %1560 = vmatpush1.msra.mxu0 0.0
    %1561 = vmatprep.subr.mxu0 0.0
    %1562 = vmatpush1.msra.mxu0 0.0
    %1563 = vmatprep.subr.mxu0 0.0
    %1564 = vmatpush1.msra.mxu0 0.0
    %1565 = vmatprep.subr.mxu0 0.0
    %1566 = vmatpush1.msra.mxu0 0.0
    %1567 = vmatprep.subr.mxu0 0.0
    %1568 = vmatpush1.msra.mxu0 0.0
    %1569 = vmatprep.subr.mxu0 0.0
    %1570 = vmatpush1.msra.mxu0 0.0
    %1571 = vmatprep.subr.mxu0 0.0
    %1572 = vmatpush1.msra.mxu0 0.0
    %1573 = vmatprep.subr.mxu0 0.0
    %1574 = vmatpush1.msra.mxu0 0.0
    %1575 = vmatprep.subr.mxu0 0.0
    %1576 = vmatpush1.msra.mxu0 0.0
    %1577 = vmatprep.subr.mxu0 0.0
    %1578 = vmatpush1.msra.mxu0 0.0
    %1579 = vmatprep.subr.mxu0 0.0
    %1580 = vmatpush1.msra.mxu0 0.0
    %1581 = vmatprep.subr.mxu0 0.0
    %1582 = vmatpush1.msra.mxu0 0.0
    %1583 = vmatprep.subr.mxu0 0.0
    %1584 = vmatpush1.msra.mxu0 0.0
    %1585 = vmatprep.subr.mxu0 0.0
    %1586 = vmatpush1.msra.mxu0 0.0
    %1587 = vmatprep.subr.mxu0 0.0
    %1588 = vmatpush1.msra.mxu0 0.0
    %1589 = vmatprep.subr.mxu0 0.0
    %1590 = vmatpush1.msra.mxu0 0.0
    %1591 = vmatprep.subr.mxu0 0.0
    %1592 = vmatpush1.msra.mxu0 0.0
    %1593 = vmatprep.subr.mxu0 0.0
    %1594 = vmatpush1.msra.mxu0 0.0
    %1595 = vmatprep.subr.mxu0 0.0
    %1596 = vmatpush1.msra.mxu0 0.0
    %1597 = vmatprep.subr.mxu0 0.0
    %1598 = vmatpush1.msra.mxu0 0.0
    %1599 = vmatprep.subr.mxu0 0.0
    %1600 = vmatpush1.msra.mxu0 0.0
    %1601 = vmatprep.subr.mxu0 0.0
    %1602 = vmatpush1.msra.mxu0 0.0
    %1603 = vmatprep.subr.mxu0 0.0
    %1604 = vmatpush1.msra.mxu0 0.0
    %1605 = vmatprep.subr.mxu0 0.0
    %1606 = vmatpush1.msra.mxu0 0.0
    %1607 = vmatprep.subr.mxu0 0.0
    %1608 = vmatpush1.msra.mxu0 0.0
    %1609 = vmatprep.subr.mxu0 0.0
    %1610 = vmatpush1.msra.mxu0 0.0
    %1611 = vmatprep.subr.mxu0 0.0
    %1612 = vmatpush1.msra.mxu0 0.0
    %1613 = vmatprep.subr.mxu0 0.0
    %1614 = vmatpush1.msra.mxu0 0.0
    %1615 = vmatprep.mubr.f32.mxu0 0.0
    %1616 = vmatmul.mubr.f32.gmra.mrb[0].mxu0 %v1549
    %v1617 = vpop.f32.mrb[0].mxu0
    %v1618 = vadd.f32 0.0, %v1617
    %v1619 = vpop.f32.mrb[0].mxu0
    %1620 = vdwg.mxu0
    %s1621 = scalar_lea.vmem %s9, 32
    %v1622 = vld [vmem:[%s1621] sm:$0xff]
    %v1623 = vld [vmem:[%s1621 + $0x8] sm:$0xff]
    %v1624 = vld [vmem:[%s1621 + $0x10] sm:$0xff]
    %v1625 = vld [vmem:[%s1621 + $0x18] sm:$0xff]
    %v1627 = vsel %vm545, %v1618, 0
    %1629 = vmatprep.subr.mxu0 0.0
    %1630 = vmatpush1.msra.mxu0 %v1627
    %1631 = vmatprep.subr.mxu0 0.0
    %1632 = vmatpush1.msra.mxu0 0.0
    %1633 = vmatprep.subr.mxu0 0.0
    %1634 = vmatpush1.msra.mxu0 0.0
    %1635 = vmatprep.subr.mxu0 0.0
    %1636 = vmatpush1.msra.mxu0 0.0
    %1637 = vmatprep.subr.mxu0 0.0
    %1638 = vmatpush1.msra.mxu0 0.0
    %1639 = vmatprep.subr.mxu0 0.0
    %1640 = vmatpush1.msra.mxu0 0.0
    %1641 = vmatprep.subr.mxu0 0.0
    %1642 = vmatpush1.msra.mxu0 0.0
    %1643 = vmatprep.subr.mxu0 0.0
    %1644 = vmatpush1.msra.mxu0 0.0
    %1645 = vmatprep.subr.mxu0 0.0
    %1646 = vmatpush1.msra.mxu0 0.0
    %1647 = vmatprep.subr.mxu0 0.0
    %1648 = vmatpush1.msra.mxu0 0.0
    %1649 = vmatprep.subr.mxu0 0.0
    %1650 = vmatpush1.msra.mxu0 0.0
    %1651 = vmatprep.subr.mxu0 0.0
    %1652 = vmatpush1.msra.mxu0 0.0
    %1653 = vmatprep.subr.mxu0 0.0
    %1654 = vmatpush1.msra.mxu0 0.0
    %1655 = vmatprep.subr.mxu0 0.0
    %1656 = vmatpush1.msra.mxu0 0.0
    %1657 = vmatprep.subr.mxu0 0.0
    %1658 = vmatpush1.msra.mxu0 0.0
    %1659 = vmatprep.subr.mxu0 0.0
    %1660 = vmatpush1.msra.mxu0 0.0
    %1661 = vmatprep.subr.mxu0 0.0
    %1662 = vmatpush1.msra.mxu0 0.0
    %1663 = vmatprep.subr.mxu0 0.0
    %1664 = vmatpush1.msra.mxu0 0.0
    %1665 = vmatprep.subr.mxu0 0.0
    %1666 = vmatpush1.msra.mxu0 0.0
    %1667 = vmatprep.subr.mxu0 0.0
    %1668 = vmatpush1.msra.mxu0 0.0
    %1669 = vmatprep.subr.mxu0 0.0
    %1670 = vmatpush1.msra.mxu0 0.0
    %1671 = vmatprep.subr.mxu0 0.0
    %1672 = vmatpush1.msra.mxu0 0.0
    %1673 = vmatprep.subr.mxu0 0.0
    %1674 = vmatpush1.msra.mxu0 0.0
    %1675 = vmatprep.subr.mxu0 0.0
    %1676 = vmatpush1.msra.mxu0 0.0
    %1677 = vmatprep.subr.mxu0 0.0
    %1678 = vmatpush1.msra.mxu0 0.0
    %1679 = vmatprep.subr.mxu0 0.0
    %1680 = vmatpush1.msra.mxu0 0.0
    %1681 = vmatprep.subr.mxu0 0.0
    %1682 = vmatpush1.msra.mxu0 0.0
    %1683 = vmatprep.subr.mxu0 0.0
    %1684 = vmatpush1.msra.mxu0 0.0
    %1685 = vmatprep.subr.mxu0 0.0
    %1686 = vmatpush1.msra.mxu0 0.0
    %1687 = vmatprep.subr.mxu0 0.0
    %1688 = vmatpush1.msra.mxu0 0.0
    %1689 = vmatprep.subr.mxu0 0.0
    %1690 = vmatpush1.msra.mxu0 0.0
    %1691 = vmatprep.subr.mxu0 0.0
    %1692 = vmatpush1.msra.mxu0 0.0
    %1693 = vmatprep.mubr.f32.mxu0 0.0
    %1694 = vmatmul.mubr.f32.gmra.mrb[0].mxu0 %v540
    %v1695 = vpop.f32.mrb[0].mxu0
    %v1696 = vadd.f32 0.0, %v1695
    %v1697 = vpop.f32.mrb[0].mxu0
    %1698 = vmatprep.mubr.f32.mxu0 0.0
    %1699 = vmatmul.mubr.f32.gmra.mrb[0].mxu0 %v543
    %v1700 = vpop.f32.mrb[0].mxu0
    %v1701 = vadd.f32 0.0, %v1700
    %v1702 = vpop.f32.mrb[0].mxu0
    %1703 = vdwg.mxu0
    %1704 = vmatprep.subr.mxu0 0.0
    %1705 = vmatpush1.msra.mxu0 %v1622
    %1706 = vmatprep.subr.mxu0 0.0
    %1707 = vmatpush1.msra.mxu0 %v1623
    %1708 = vmatprep.subr.mxu0 0.0
    %1709 = vmatpush1.msra.mxu0 %v1624
    %1710 = vmatprep.subr.mxu0 0.0
    %1711 = vmatpush1.msra.mxu0 %v1625
    %1712 = vmatprep.subr.mxu0 0.0
    %1713 = vmatpush1.msra.mxu0 0.0
    %1714 = vmatprep.subr.mxu0 0.0
    %1715 = vmatpush1.msra.mxu0 0.0
    %1716 = vmatprep.subr.mxu0 0.0
    %1717 = vmatpush1.msra.mxu0 0.0
    %1718 = vmatprep.subr.mxu0 0.0
    %1719 = vmatpush1.msra.mxu0 0.0
    %1720 = vmatprep.subr.mxu0 0.0
    %1721 = vmatpush1.msra.mxu0 0.0
    %1722 = vmatprep.subr.mxu0 0.0
    %1723 = vmatpush1.msra.mxu0 0.0
    %1724 = vmatprep.subr.mxu0 0.0
    %1725 = vmatpush1.msra.mxu0 0.0
    %1726 = vmatprep.subr.mxu0 0.0
    %1727 = vmatpush1.msra.mxu0 0.0
    %1728 = vmatprep.subr.mxu0 0.0
    %1729 = vmatpush1.msra.mxu0 0.0
    %1730 = vmatprep.subr.mxu0 0.0
    %1731 = vmatpush1.msra.mxu0 0.0
    %1732 = vmatprep.subr.mxu0 0.0
    %1733 = vmatpush1.msra.mxu0 0.0
    %1734 = vmatprep.subr.mxu0 0.0
    %1735 = vmatpush1.msra.mxu0 0.0
    %1736 = vmatprep.subr.mxu0 0.0
    %1737 = vmatpush1.msra.mxu0 0.0
    %1738 = vmatprep.subr.mxu0 0.0
    %1739 = vmatpush1.msra.mxu0 0.0
    %1740 = vmatprep.subr.mxu0 0.0
    %1741 = vmatpush1.msra.mxu0 0.0
    %1742 = vmatprep.subr.mxu0 0.0
    %1743 = vmatpush1.msra.mxu0 0.0
    %1744 = vmatprep.subr.mxu0 0.0
    %1745 = vmatpush1.msra.mxu0 0.0
    %1746 = vmatprep.subr.mxu0 0.0
    %1747 = vmatpush1.msra.mxu0 0.0
    %1748 = vmatprep.subr.mxu0 0.0
    %1749 = vmatpush1.msra.mxu0 0.0
    %1750 = vmatprep.subr.mxu0 0.0
    %1751 = vmatpush1.msra.mxu0 0.0
    %1752 = vmatprep.subr.mxu0 0.0
    %1753 = vmatpush1.msra.mxu0 0.0
    %1754 = vmatprep.subr.mxu0 0.0
    %1755 = vmatpush1.msra.mxu0 0.0
    %1756 = vmatprep.subr.mxu0 0.0
    %1757 = vmatpush1.msra.mxu0 0.0
    %1758 = vmatprep.subr.mxu0 0.0
    %1759 = vmatpush1.msra.mxu0 0.0
    %1760 = vmatprep.subr.mxu0 0.0
    %1761 = vmatpush1.msra.mxu0 0.0
    %1762 = vmatprep.subr.mxu0 0.0
    %1763 = vmatpush1.msra.mxu0 0.0
    %1764 = vmatprep.subr.mxu0 0.0
    %1765 = vmatpush1.msra.mxu0 0.0
    %1766 = vmatprep.subr.mxu0 0.0
    %1767 = vmatpush1.msra.mxu0 0.0
    %1768 = vmatprep.mubr.f32.mxu0 0.0
    %1769 = vmatmul.mubr.f32.gmra.mrb[0].mxu0 %v815
    %v1770 = vpop.f32.mrb[0].mxu0
    %v1771 = vadd.f32 %v1696, %v1770
    %v1772 = vpop.f32.mrb[0].mxu0
    %1773 = vmatprep.mubr.f32.mxu0 0.0
    %1774 = vmatmul.mubr.f32.gmra.mrb[0].mxu0 %v818
    %v1775 = vpop.f32.mrb[0].mxu0
    %v1776 = vadd.f32 %v1701, %v1775
    %v1777 = vpop.f32.mrb[0].mxu0
    %1778 = vdwg.mxu0
    %s1779 = scalar_lea.vmem %s11, 32
    %v1780 = vld [vmem:[%s1779] sm:$0xff]
    %v1781 = vld [vmem:[%s1779 + $0x8] sm:$0xff]
    %v1782 = vld [vmem:[%s1779 + $0x10] sm:$0xff]
    %v1783 = vld [vmem:[%s1779 + $0x18] sm:$0xff]
    %v1785 = vsel %vm137, %v1541, 0
    %v1788 = vsel %vm137, %v1542, 0
    %1790 = vmatprep.subr.mxu0 0.0
    %1791 = vmatpush1.msra.mxu0 %v1780
    %1792 = vmatprep.subr.mxu0 0.0
    %1793 = vmatpush1.msra.mxu0 %v1781
    %1794 = vmatprep.subr.mxu0 0.0
    %1795 = vmatpush1.msra.mxu0 %v1782
    %1796 = vmatprep.subr.mxu0 0.0
    %1797 = vmatpush1.msra.mxu0 %v1783
    %1798 = vmatprep.subr.mxu0 0.0
    %1799 = vmatpush1.msra.mxu0 0.0
    %1800 = vmatprep.subr.mxu0 0.0
    %1801 = vmatpush1.msra.mxu0 0.0
    %1802 = vmatprep.subr.mxu0 0.0
    %1803 = vmatpush1.msra.mxu0 0.0
    %1804 = vmatprep.subr.mxu0 0.0
    %1805 = vmatpush1.msra.mxu0 0.0
    %1806 = vmatprep.subr.mxu0 0.0
    %1807 = vmatpush1.msra.mxu0 0.0
    %1808 = vmatprep.subr.mxu0 0.0
    %1809 = vmatpush1.msra.mxu0 0.0
    %1810 = vmatprep.subr.mxu0 0.0
    %1811 = vmatpush1.msra.mxu0 0.0
    %1812 = vmatprep.subr.mxu0 0.0
    %1813 = vmatpush1.msra.mxu0 0.0
    %1814 = vmatprep.subr.mxu0 0.0
    %1815 = vmatpush1.msra.mxu0 0.0
    %1816 = vmatprep.subr.mxu0 0.0
    %1817 = vmatpush1.msra.mxu0 0.0
    %1818 = vmatprep.subr.mxu0 0.0
    %1819 = vmatpush1.msra.mxu0 0.0
    %1820 = vmatprep.subr.mxu0 0.0
    %1821 = vmatpush1.msra.mxu0 0.0
    %1822 = vmatprep.subr.mxu0 0.0
    %1823 = vmatpush1.msra.mxu0 0.0
    %1824 = vmatprep.subr.mxu0 0.0
    %1825 = vmatpush1.msra.mxu0 0.0
    %1826 = vmatprep.subr.mxu0 0.0
    %1827 = vmatpush1.msra.mxu0 0.0
    %1828 = vmatprep.subr.mxu0 0.0
    %1829 = vmatpush1.msra.mxu0 0.0
    %1830 = vmatprep.subr.mxu0 0.0
    %1831 = vmatpush1.msra.mxu0 0.0
    %1832 = vmatprep.subr.mxu0 0.0
    %1833 = vmatpush1.msra.mxu0 0.0
    %1834 = vmatprep.subr.mxu0 0.0
    %1835 = vmatpush1.msra.mxu0 0.0
    %1836 = vmatprep.subr.mxu0 0.0
    %1837 = vmatpush1.msra.mxu0 0.0
    %1838 = vmatprep.subr.mxu0 0.0
    %1839 = vmatpush1.msra.mxu0 0.0
    %1840 = vmatprep.subr.mxu0 0.0
    %1841 = vmatpush1.msra.mxu0 0.0
    %1842 = vmatprep.subr.mxu0 0.0
    %1843 = vmatpush1.msra.mxu0 0.0
    %1844 = vmatprep.subr.mxu0 0.0
    %1845 = vmatpush1.msra.mxu0 0.0
    %1846 = vmatprep.subr.mxu0 0.0
    %1847 = vmatpush1.msra.mxu0 0.0
    %1848 = vmatprep.subr.mxu0 0.0
    %1849 = vmatpush1.msra.mxu0 0.0
    %1850 = vmatprep.subr.mxu0 0.0
    %1851 = vmatpush1.msra.mxu0 0.0
    %1852 = vmatprep.subr.mxu0 0.0
    %1853 = vmatpush1.msra.mxu0 0.0
    %1854 = vmatprep.mubr.f32.mxu0 0.0
    %1855 = vmatmul.mubr.f32.gmra.mrb[0].mxu0 %v1785
    %v1856 = vpop.f32.mrb[0].mxu0
    %v1857 = vadd.f32 0.0, %v1856
    %v1858 = vpop.f32.mrb[0].mxu0
    %1859 = vmatprep.mubr.f32.mxu0 0.0
    %1860 = vmatmul.mubr.f32.gmra.mrb[0].mxu0 %v1788
    %v1861 = vpop.f32.mrb[0].mxu0
    %v1862 = vadd.f32 0.0, %v1861
    %v1863 = vpop.f32.mrb[0].mxu0
    %1864 = vdwg.mxu0
    %v1865 = vadd.f32 %v1771, %v1857
    %v1866 = vadd.f32 %v1776, %v1862
    %s1867 = scalar_lea.vmem %s12, 1
    %v1868 = vld [vmem:[%s1867] sm:$0x1]
    %v1870 = vlaneseq
    %v1871 = vshrl.u32 %v1870, 7
    %v1872 = vsub.s32 0, %v1871
    %v1873 = vrot.slane %v1868, %v1872
    %v1875 = vadd.f32 %v1865, %v1873
    %v1876 = vadd.f32 %v1866, %v1873
    %vm1877 = vcmp.ge.f32.partialorder %v1875, 0.0
    %vm1878 = vcmp.ge.f32.partialorder %v1876, 0.0
    %v1879 = vmul.f32 %v1875, 0.01
    %v1880 = vmul.f32 %v1876, 0.01
    %v1881 = vsel %vm1877, %v1875, %v1879
    %v1882 = vsel %vm1878, %v1876, %v1880
    %v1883 = vadd.f32 %v1881, %v801
    %v1884 = vadd.f32 %v1882, %v802
    %s1885 = scalar_lea.vmem %s15, 32
    %v1886 = vld [vmem:[%s1885] sm:$0xff]
    %v1887 = vld [vmem:[%s1885 + $0x8] sm:$0xff]
    %v1888 = vld [vmem:[%s1885 + $0x10] sm:$0xff]
    %v1889 = vld [vmem:[%s1885 + $0x18] sm:$0xff]
    %s1890 = scalar_lea.vmem %s16, 1
    %v1891 = vld [vmem:[%s1890] sm:$0x1]
    %v1893 = vlaneseq
    %v1894 = vshrl.u32 %v1893, 7
    %v1895 = vsub.s32 0, %v1894
    %v1896 = vrot.slane %v1891, %v1895
    %v1899 = vsel %vm137, %v1883, 0
    %v1902 = vsel %vm137, %v1884, 0
    %1904 = vmatprep.subr.mxu0 0.0
    %1905 = vmatpush1.msra.mxu0 %v1886
    %1906 = vmatprep.subr.mxu0 0.0
    %1907 = vmatpush1.msra.mxu0 %v1887
    %1908 = vmatprep.subr.mxu0 0.0
    %1909 = vmatpush1.msra.mxu0 %v1888
    %1910 = vmatprep.subr.mxu0 0.0
    %1911 = vmatpush1.msra.mxu0 %v1889
    %1912 = vmatprep.subr.mxu0 0.0
    %1913 = vmatpush1.msra.mxu0 0.0
    %1914 = vmatprep.subr.mxu0 0.0
    %1915 = vmatpush1.msra.mxu0 0.0
    %1916 = vmatprep.subr.mxu0 0.0
    %1917 = vmatpush1.msra.mxu0 0.0
    %1918 = vmatprep.subr.mxu0 0.0
    %1919 = vmatpush1.msra.mxu0 0.0
    %1920 = vmatprep.subr.mxu0 0.0
    %1921 = vmatpush1.msra.mxu0 0.0
    %1922 = vmatprep.subr.mxu0 0.0
    %1923 = vmatpush1.msra.mxu0 0.0
    %1924 = vmatprep.subr.mxu0 0.0
    %1925 = vmatpush1.msra.mxu0 0.0
    %1926 = vmatprep.subr.mxu0 0.0
    %1927 = vmatpush1.msra.mxu0 0.0
    %1928 = vmatprep.subr.mxu0 0.0
    %1929 = vmatpush1.msra.mxu0 0.0
    %1930 = vmatprep.subr.mxu0 0.0
    %1931 = vmatpush1.msra.mxu0 0.0
    %1932 = vmatprep.subr.mxu0 0.0
    %1933 = vmatpush1.msra.mxu0 0.0
    %1934 = vmatprep.subr.mxu0 0.0
    %1935 = vmatpush1.msra.mxu0 0.0
    %1936 = vmatprep.subr.mxu0 0.0
    %1937 = vmatpush1.msra.mxu0 0.0
    %1938 = vmatprep.subr.mxu0 0.0
    %1939 = vmatpush1.msra.mxu0 0.0
    %1940 = vmatprep.subr.mxu0 0.0
    %1941 = vmatpush1.msra.mxu0 0.0
    %1942 = vmatprep.subr.mxu0 0.0
    %1943 = vmatpush1.msra.mxu0 0.0
    %1944 = vmatprep.subr.mxu0 0.0
    %1945 = vmatpush1.msra.mxu0 0.0
    %1946 = vmatprep.subr.mxu0 0.0
    %1947 = vmatpush1.msra.mxu0 0.0
    %1948 = vmatprep.subr.mxu0 0.0
    %1949 = vmatpush1.msra.mxu0 0.0
    %1950 = vmatprep.subr.mxu0 0.0
    %1951 = vmatpush1.msra.mxu0 0.0
    %1952 = vmatprep.subr.mxu0 0.0
    %1953 = vmatpush1.msra.mxu0 0.0
    %1954 = vmatprep.subr.mxu0 0.0
    %1955 = vmatpush1.msra.mxu0 0.0
    %1956 = vmatprep.subr.mxu0 0.0
    %1957 = vmatpush1.msra.mxu0 0.0
    %1958 = vmatprep.subr.mxu0 0.0
    %1959 = vmatpush1.msra.mxu0 0.0
    %1960 = vmatprep.subr.mxu0 0.0
    %1961 = vmatpush1.msra.mxu0 0.0
    %1962 = vmatprep.subr.mxu0 0.0
    %1963 = vmatpush1.msra.mxu0 0.0
    %1964 = vmatprep.subr.mxu0 0.0
    %1965 = vmatpush1.msra.mxu0 0.0
    %1966 = vmatprep.subr.mxu0 0.0
    %1967 = vmatpush1.msra.mxu0 0.0
    %1968 = vmatprep.mubr.f32.mxu0 0.0
    %1969 = vmatmul.mubr.f32.gmra.mrb[0].mxu0 %v1899
    %v1970 = vpop.f32.mrb[0].mxu0
    %v1971 = vadd.f32 %v1896, %v1970
    %v1972 = vpop.f32.mrb[0].mxu0
    %1973 = vmatprep.mubr.f32.mxu0 0.0
    %1974 = vmatmul.mubr.f32.gmra.mrb[0].mxu0 %v1902
    %v1975 = vpop.f32.mrb[0].mxu0
    %v1976 = vadd.f32 %v1896, %v1975
    %v1977 = vpop.f32.mrb[0].mxu0
    %1978 = vdwg.mxu0
    %vm1979 = vcmp.ge.f32.partialorder %v1971, 0.0
    %vm1980 = vcmp.ge.f32.partialorder %v1976, 0.0
    %v1981 = vmul.f32 %v1971, 0.01
    %v1982 = vmul.f32 %v1976, 0.01
    %v1983 = vsel %vm1979, %v1971, %v1981
    %v1984 = vsel %vm1980, %v1976, %v1982
    %s1985 = scalar_lea.vmem %s13, 1
    %v1986 = vld [vmem:[%s1985] sm:$0x1]
    %s1987 = scalar_lea.vmem %s14, 1
    %v1988 = vld [vmem:[%s1987] sm:$0x1]
    %1990 = vset.pattern.permute.xlu0 0
    %1991 = vperm.xlu0 %1990, %v1988
    %v1992 = vpop.permute.xlu0 %1991
    %v1994 = vlaneseq
    %v1995 = vshrl.u32 %v1994, 7
    %v1996 = vsub.s32 0, %v1995
    %v1997 = vrot.slane %v1992, %v1996
    %v1999 = vsel %vm137, %v1986, 0
    %2001 = vmatprep.subr.mxu0 0.0
    %2002 = vmatpush1.xpose.msra.mxu0 %v1899
    %2003 = vmatprep.subr.mxu0 0.0
    %2004 = vmatpush1.xpose.msra.mxu0 %v1902
    %2005 = vmatprep.subr.mxu0 0.0
    %2006 = vmatpush1.xpose.msra.mxu0 0.0
    %2007 = vmatprep.subr.mxu0 0.0
    %2008 = vmatpush1.xpose.msra.mxu0 0.0
    %2009 = vmatprep.subr.mxu0 0.0
    %2010 = vmatpush1.xpose.msra.mxu0 0.0
    %2011 = vmatprep.subr.mxu0 0.0
    %2012 = vmatpush1.xpose.msra.mxu0 0.0
    %2013 = vmatprep.subr.mxu0 0.0
    %2014 = vmatpush1.xpose.msra.mxu0 0.0
    %2015 = vmatprep.subr.mxu0 0.0
    %2016 = vmatpush1.xpose.msra.mxu0 0.0
    %2017 = vmatprep.subr.mxu0 0.0
    %2018 = vmatpush1.xpose.msra.mxu0 0.0
    %2019 = vmatprep.subr.mxu0 0.0
    %2020 = vmatpush1.xpose.msra.mxu0 0.0
    %2021 = vmatprep.subr.mxu0 0.0
    %2022 = vmatpush1.xpose.msra.mxu0 0.0
    %2023 = vmatprep.subr.mxu0 0.0
    %2024 = vmatpush1.xpose.msra.mxu0 0.0
    %2025 = vmatprep.subr.mxu0 0.0
    %2026 = vmatpush1.xpose.msra.mxu0 0.0
    %2027 = vmatprep.subr.mxu0 0.0
    %2028 = vmatpush1.xpose.msra.mxu0 0.0
    %2029 = vmatprep.subr.mxu0 0.0
    %2030 = vmatpush1.xpose.msra.mxu0 0.0
    %2031 = vmatprep.subr.mxu0 0.0
    %2032 = vmatpush1.xpose.msra.mxu0 0.0
    %2033 = vmatprep.subr.mxu0 0.0
    %2034 = vmatpush1.xpose.msra.mxu0 0.0
    %2035 = vmatprep.subr.mxu0 0.0
    %2036 = vmatpush1.xpose.msra.mxu0 0.0
    %2037 = vmatprep.subr.mxu0 0.0
    %2038 = vmatpush1.xpose.msra.mxu0 0.0
    %2039 = vmatprep.subr.mxu0 0.0
    %2040 = vmatpush1.xpose.msra.mxu0 0.0
    %2041 = vmatprep.subr.mxu0 0.0
    %2042 = vmatpush1.xpose.msra.mxu0 0.0
    %2043 = vmatprep.subr.mxu0 0.0
    %2044 = vmatpush1.xpose.msra.mxu0 0.0
    %2045 = vmatprep.subr.mxu0 0.0
    %2046 = vmatpush1.xpose.msra.mxu0 0.0
    %2047 = vmatprep.subr.mxu0 0.0
    %2048 = vmatpush1.xpose.msra.mxu0 0.0
    %2049 = vmatprep.subr.mxu0 0.0
    %2050 = vmatpush1.xpose.msra.mxu0 0.0
    %2051 = vmatprep.subr.mxu0 0.0
    %2052 = vmatpush1.xpose.msra.mxu0 0.0
    %2053 = vmatprep.subr.mxu0 0.0
    %2054 = vmatpush1.xpose.msra.mxu0 0.0
    %2055 = vmatprep.subr.mxu0 0.0
    %2056 = vmatpush1.xpose.msra.mxu0 0.0
    %2057 = vmatprep.subr.mxu0 0.0
    %2058 = vmatpush1.xpose.msra.mxu0 0.0
    %2059 = vmatprep.subr.mxu0 0.0
    %2060 = vmatpush1.xpose.msra.mxu0 0.0
    %2061 = vmatprep.subr.mxu0 0.0
    %2062 = vmatpush1.xpose.msra.mxu0 0.0
    %2063 = vmatprep.subr.mxu0 0.0
    %2064 = vmatpush1.xpose.msra.mxu0 0.0
    %2065 = vmatprep.mubr.f32.mxu0 0.0
    %2066 = vmatmul.mubr.f32.gmra.mrb[0].mxu0 %v1999
    %v2067 = vpop.f32.mrb[0].mxu0
    %v2068 = vadd.f32 %v1997, %v2067
    %v2069 = vpop.f32.mrb[0].mxu0
    %2070 = vdwg.mxu0
    %v2071 = vlaneseq
    %v2072 = vshrl.u32 %v2071, 7
    %v2073 = vsub.s32 0, %v2072
    %v2074 = vrot.slane %v2068, %v2073
    %v2075 = vsel %vm112, %v2074, -1e+30
    %v2076 = vsel %vm990, %v2075, -inf
    %2077 = vmax.xlane.f32.xlu0 %v2076
    %v2078 = vpop.xlane.xlu0 %2077
    %v2079 = vsub.f32 %v2074, %v2078
    %v2080 = vsel %vm112, %v2079, -100.0
    %v2081 = vmul.f32 %v2080, 1.442695
    %v2082 = vpow.pop %v2081
    %v2083 = vsel %vm112, %v2082, 0.0
    %v2084 = vsel %vm990, %v2083, 0.0
    %2085 = vadd.xlane.f32.xlu0 %v2084
    %v2086 = vpop.xlane.xlu0 %2085
    %v2087 = vmax.f32 %v2086, 1e-30
    %v2088 = vrcp.pop %v2087
    %v2089 = vmul.f32 %v2083, %v2088
    %v2091 = vsel %vm311, %v2089, 0
    %v2094 = vsel %vm321, %v1984, 0
    %2096 = vmatprep.subr.mxu0 0.0
    %2097 = vmatpush1.msra.mxu0 %v1983
    %2098 = vmatprep.subr.mxu0 0.0
    %2099 = vmatpush1.msra.mxu0 %v2094
    %2100 = vmatprep.subr.mxu0 0.0
    %2101 = vmatpush1.msra.mxu0 0.0
    %2102 = vmatprep.subr.mxu0 0.0
    %2103 = vmatpush1.msra.mxu0 0.0
    %2104 = vmatprep.subr.mxu0 0.0
    %2105 = vmatpush1.msra.mxu0 0.0
    %2106 = vmatprep.subr.mxu0 0.0
    %2107 = vmatpush1.msra.mxu0 0.0
    %2108 = vmatprep.subr.mxu0 0.0
    %2109 = vmatpush1.msra.mxu0 0.0
    %2110 = vmatprep.subr.mxu0 0.0
    %2111 = vmatpush1.msra.mxu0 0.0
    %2112 = vmatprep.subr.mxu0 0.0
    %2113 = vmatpush1.msra.mxu0 0.0
    %2114 = vmatprep.subr.mxu0 0.0
    %2115 = vmatpush1.msra.mxu0 0.0
    %2116 = vmatprep.subr.mxu0 0.0
    %2117 = vmatpush1.msra.mxu0 0.0
    %2118 = vmatprep.subr.mxu0 0.0
    %2119 = vmatpush1.msra.mxu0 0.0
    %2120 = vmatprep.subr.mxu0 0.0
    %2121 = vmatpush1.msra.mxu0 0.0
    %2122 = vmatprep.subr.mxu0 0.0
    %2123 = vmatpush1.msra.mxu0 0.0
    %2124 = vmatprep.subr.mxu0 0.0
    %2125 = vmatpush1.msra.mxu0 0.0
    %2126 = vmatprep.subr.mxu0 0.0
    %2127 = vmatpush1.msra.mxu0 0.0
    %2128 = vmatprep.subr.mxu0 0.0
    %2129 = vmatpush1.msra.mxu0 0.0
    %2130 = vmatprep.subr.mxu0 0.0
    %2131 = vmatpush1.msra.mxu0 0.0
    %2132 = vmatprep.subr.mxu0 0.0
    %2133 = vmatpush1.msra.mxu0 0.0
    %2134 = vmatprep.subr.mxu0 0.0
    %2135 = vmatpush1.msra.mxu0 0.0
    %2136 = vmatprep.subr.mxu0 0.0
    %2137 = vmatpush1.msra.mxu0 0.0
    %2138 = vmatprep.subr.mxu0 0.0
    %2139 = vmatpush1.msra.mxu0 0.0
    %2140 = vmatprep.subr.mxu0 0.0
    %2141 = vmatpush1.msra.mxu0 0.0
    %2142 = vmatprep.subr.mxu0 0.0
    %2143 = vmatpush1.msra.mxu0 0.0
    %2144 = vmatprep.subr.mxu0 0.0
    %2145 = vmatpush1.msra.mxu0 0.0
    %2146 = vmatprep.subr.mxu0 0.0
    %2147 = vmatpush1.msra.mxu0 0.0
    %2148 = vmatprep.subr.mxu0 0.0
    %2149 = vmatpush1.msra.mxu0 0.0
    %2150 = vmatprep.subr.mxu0 0.0
    %2151 = vmatpush1.msra.mxu0 0.0
    %2152 = vmatprep.subr.mxu0 0.0
    %2153 = vmatpush1.msra.mxu0 0.0
    %2154 = vmatprep.subr.mxu0 0.0
    %2155 = vmatpush1.msra.mxu0 0.0
    %2156 = vmatprep.subr.mxu0 0.0
    %2157 = vmatpush1.msra.mxu0 0.0
    %2158 = vmatprep.subr.mxu0 0.0
    %2159 = vmatpush1.msra.mxu0 0.0
    %2160 = vmatprep.mubr.f32.mxu0 0.0
    %2161 = vmatmul.mubr.f32.gmra.mrb[0].mxu0 %v2091
    %v2162 = vpop.f32.mrb[0].mxu0
    %v2163 = vadd.f32 0.0, %v2162
    %v2164 = vpop.f32.mrb[0].mxu0
    %2165 = vdwg.mxu0
    %s2166 = scalar_lea.vmem %s17, 32
    %v2167 = vld [vmem:[%s2166] sm:$0xff]
    %v2168 = vld [vmem:[%s2166 + $0x8] sm:$0xff]
    %v2169 = vld [vmem:[%s2166 + $0x10] sm:$0xff]
    %v2170 = vld [vmem:[%s2166 + $0x18] sm:$0xff]
    %s2171 = scalar_lea.vmem %s18, 32
    %v2172 = vld [vmem:[%s2171] sm:$0xff]
    %v2173 = vld [vmem:[%s2171 + $0x8] sm:$0xff]
    %v2174 = vld [vmem:[%s2171 + $0x10] sm:$0xff]
    %v2175 = vld [vmem:[%s2171 + $0x18] sm:$0xff]
    %2176 = vmatprep.subr.mxu0 0.0
    %2177 = vmatpush1.msra.mxu0 %v2172
    %2178 = vmatprep.subr.mxu0 0.0
    %2179 = vmatpush1.msra.mxu0 %v2173
    %2180 = vmatprep.subr.mxu0 0.0
    %2181 = vmatpush1.msra.mxu0 %v2174
    %2182 = vmatprep.subr.mxu0 0.0
    %2183 = vmatpush1.msra.mxu0 %v2175
    %2184 = vmatprep.subr.mxu0 0.0
    %2185 = vmatpush1.msra.mxu0 0.0
    %2186 = vmatprep.subr.mxu0 0.0
    %2187 = vmatpush1.msra.mxu0 0.0
    %2188 = vmatprep.subr.mxu0 0.0
    %2189 = vmatpush1.msra.mxu0 0.0
    %2190 = vmatprep.subr.mxu0 0.0
    %2191 = vmatpush1.msra.mxu0 0.0
    %2192 = vmatprep.subr.mxu0 0.0
    %2193 = vmatpush1.msra.mxu0 0.0
    %2194 = vmatprep.subr.mxu0 0.0
    %2195 = vmatpush1.msra.mxu0 0.0
    %2196 = vmatprep.subr.mxu0 0.0
    %2197 = vmatpush1.msra.mxu0 0.0
    %2198 = vmatprep.subr.mxu0 0.0
    %2199 = vmatpush1.msra.mxu0 0.0
    %2200 = vmatprep.subr.mxu0 0.0
    %2201 = vmatpush1.msra.mxu0 0.0
    %2202 = vmatprep.subr.mxu0 0.0
    %2203 = vmatpush1.msra.mxu0 0.0
    %2204 = vmatprep.subr.mxu0 0.0
    %2205 = vmatpush1.msra.mxu0 0.0
    %2206 = vmatprep.subr.mxu0 0.0
    %2207 = vmatpush1.msra.mxu0 0.0
    %2208 = vmatprep.subr.mxu0 0.0
    %2209 = vmatpush1.msra.mxu0 0.0
    %2210 = vmatprep.subr.mxu0 0.0
    %2211 = vmatpush1.msra.mxu0 0.0
    %2212 = vmatprep.subr.mxu0 0.0
    %2213 = vmatpush1.msra.mxu0 0.0
    %2214 = vmatprep.subr.mxu0 0.0
    %2215 = vmatpush1.msra.mxu0 0.0
    %2216 = vmatprep.subr.mxu0 0.0
    %2217 = vmatpush1.msra.mxu0 0.0
    %2218 = vmatprep.subr.mxu0 0.0
    %2219 = vmatpush1.msra.mxu0 0.0
    %2220 = vmatprep.subr.mxu0 0.0
    %2221 = vmatpush1.msra.mxu0 0.0
    %2222 = vmatprep.subr.mxu0 0.0
    %2223 = vmatpush1.msra.mxu0 0.0
    %2224 = vmatprep.subr.mxu0 0.0
    %2225 = vmatpush1.msra.mxu0 0.0
    %2226 = vmatprep.subr.mxu0 0.0
    %2227 = vmatpush1.msra.mxu0 0.0
    %2228 = vmatprep.subr.mxu0 0.0
    %2229 = vmatpush1.msra.mxu0 0.0
    %2230 = vmatprep.subr.mxu0 0.0
    %2231 = vmatpush1.msra.mxu0 0.0
    %2232 = vmatprep.subr.mxu0 0.0
    %2233 = vmatpush1.msra.mxu0 0.0
    %2234 = vmatprep.subr.mxu0 0.0
    %2235 = vmatpush1.msra.mxu0 0.0
    %2236 = vmatprep.subr.mxu0 0.0
    %2237 = vmatpush1.msra.mxu0 0.0
    %2238 = vmatprep.subr.mxu0 0.0
    %2239 = vmatpush1.msra.mxu0 0.0
    %2240 = vmatprep.mubr.f32.mxu0 0.0
    %2241 = vmatmul.mubr.f32.gmra.mrb[0].mxu0 %v1549
    %v2242 = vpop.f32.mrb[0].mxu0
    %v2243 = vadd.f32 0.0, %v2242
    %v2244 = vpop.f32.mrb[0].mxu0
    %2245 = vdwg.mxu0
    %v2247 = vsel %vm137, %v2163, 0
    %2249 = vmatprep.subr.mxu0 0.0
    %2250 = vmatpush1.msra.mxu0 %v2167
    %2251 = vmatprep.subr.mxu0 0.0
    %2252 = vmatpush1.msra.mxu0 %v2168
    %2253 = vmatprep.subr.mxu0 0.0
    %2254 = vmatpush1.msra.mxu0 %v2169
    %2255 = vmatprep.subr.mxu0 0.0
    %2256 = vmatpush1.msra.mxu0 %v2170
    %2257 = vmatprep.subr.mxu0 0.0
    %2258 = vmatpush1.msra.mxu0 0.0
    %2259 = vmatprep.subr.mxu0 0.0
    %2260 = vmatpush1.msra.mxu0 0.0
    %2261 = vmatprep.subr.mxu0 0.0
    %2262 = vmatpush1.msra.mxu0 0.0
    %2263 = vmatprep.subr.mxu0 0.0
    %2264 = vmatpush1.msra.mxu0 0.0
    %2265 = vmatprep.subr.mxu0 0.0
    %2266 = vmatpush1.msra.mxu0 0.0
    %2267 = vmatprep.subr.mxu0 0.0
    %2268 = vmatpush1.msra.mxu0 0.0
    %2269 = vmatprep.subr.mxu0 0.0
    %2270 = vmatpush1.msra.mxu0 0.0
    %2271 = vmatprep.subr.mxu0 0.0
    %2272 = vmatpush1.msra.mxu0 0.0
    %2273 = vmatprep.subr.mxu0 0.0
    %2274 = vmatpush1.msra.mxu0 0.0
    %2275 = vmatprep.subr.mxu0 0.0
    %2276 = vmatpush1.msra.mxu0 0.0
    %2277 = vmatprep.subr.mxu0 0.0
    %2278 = vmatpush1.msra.mxu0 0.0
    %2279 = vmatprep.subr.mxu0 0.0
    %2280 = vmatpush1.msra.mxu0 0.0
    %2281 = vmatprep.subr.mxu0 0.0
    %2282 = vmatpush1.msra.mxu0 0.0
    %2283 = vmatprep.subr.mxu0 0.0
    %2284 = vmatpush1.msra.mxu0 0.0
    %2285 = vmatprep.subr.mxu0 0.0
    %2286 = vmatpush1.msra.mxu0 0.0
    %2287 = vmatprep.subr.mxu0 0.0
    %2288 = vmatpush1.msra.mxu0 0.0
    %2289 = vmatprep.subr.mxu0 0.0
    %2290 = vmatpush1.msra.mxu0 0.0
    %2291 = vmatprep.subr.mxu0 0.0
    %2292 = vmatpush1.msra.mxu0 0.0
    %2293 = vmatprep.subr.mxu0 0.0
    %2294 = vmatpush1.msra.mxu0 0.0
    %2295 = vmatprep.subr.mxu0 0.0
    %2296 = vmatpush1.msra.mxu0 0.0
    %2297 = vmatprep.subr.mxu0 0.0
    %2298 = vmatpush1.msra.mxu0 0.0
    %2299 = vmatprep.subr.mxu0 0.0
    %2300 = vmatpush1.msra.mxu0 0.0
    %2301 = vmatprep.subr.mxu0 0.0
    %2302 = vmatpush1.msra.mxu0 0.0
    %2303 = vmatprep.subr.mxu0 0.0
    %2304 = vmatpush1.msra.mxu0 0.0
    %2305 = vmatprep.subr.mxu0 0.0
    %2306 = vmatpush1.msra.mxu0 0.0
    %2307 = vmatprep.subr.mxu0 0.0
    %2308 = vmatpush1.msra.mxu0 0.0
    %2309 = vmatprep.subr.mxu0 0.0
    %2310 = vmatpush1.msra.mxu0 0.0
    %2311 = vmatprep.subr.mxu0 0.0
    %2312 = vmatpush1.msra.mxu0 0.0
    %2313 = vmatprep.mubr.f32.mxu0 0.0
    %2314 = vmatmul.mubr.f32.gmra.mrb[0].mxu0 %v2247
    %v2315 = vpop.f32.mrb[0].mxu0
    %v2316 = vadd.f32 %v2243, %v2315
    %v2317 = vpop.f32.mrb[0].mxu0
    %2318 = vdwg.mxu0
    %s2319 = scalar_lea.vmem %s19, 1
    %v2320 = vld [vmem:[%s2319] sm:$0x1]
    %v2322 = vlaneseq
    %v2323 = vshrl.u32 %v2322, 7
    %v2324 = vsub.s32 0, %v2323
    %v2325 = vrot.slane %v2320, %v2324
    %v2327 = vadd.f32 %v2316, %v2325
    %vm2328 = vcmp.ge.f32.partialorder %v2327, 0.0
    %v2329 = vmul.f32 %v2327, 0.01
    %v2330 = vsel %vm2328, %v2327, %v2329
    %v2331 = vadd.f32 %v2330, %v1243
    %2332 = vst.msk [vmem:[#allocation6] sm:$0xff] %vm137, %v1883
    %vm2333 = vcmask 257024
    %2334 = vst.msk [vmem:[#allocation6 + $0x8] sm:$0xf] %vm2333, %v1884
    %vm2335 = vcmask 254976
    %2336 = vst.msk [vmem:[#allocation7] sm:$0x3] %vm2335, %v2331
    // Predicated region
    $region100: #{pallas_forward.1} parent=1 // pred_check
      _
    $region101: #{pallas_forward.1} parent=1 // pred_check_branch
      %2338 = sbr.rel (0) target = $region103
    $region102: #{pallas_forward.1} parent=1 // pred_region
      %s2340 = ssub.s32 256, 256
      %2341 = vsyncadd [#allocation4], %s2340
      %s2342 = sshll.u32 [#allocation6], 4
      %s2343 = int_to_ptr.vmem [resolvable:$true] %s2342
      %2348 = dma.vmem_to_hbm [thread:$0]  %s2343, 256, %s20, [#allocation4], 128, 128, 8
    $region103: #{pallas_forward.1} parent=1 // pred_fallthru
      _
    // Predicated region
    $region104: #{pallas_forward.1} parent=1 // pred_check
      _
    $region105: #{pallas_forward.1} parent=1 // pred_check_branch
      %2350 = sbr.rel (0) target = $region107
    $region106: #{pallas_forward.1} parent=1 // pred_region
      %s2352 = ssub.s32 32, 32
      %2353 = vsyncadd [#allocation8], %s2352
      %s2355 = sshll.u32 [#allocation7], 4
      %s2356 = int_to_ptr.vmem [resolvable:$true] %s2355
      %2358 = dma.vmem_to_hbm [thread:$0]  %s2356, 32, %s21, [#allocation8]
    $region107: #{pallas_forward.1} parent=1 // pred_fallthru
      _
    // Predicated region
    $region108: #{pallas_forward.1} parent=1 // pred_check
      _
    $region109: #{pallas_forward.1} parent=1 // pred_check_branch
      %2360 = sbr.rel (0) target = $region111
    $region110: #{pallas_forward.1} parent=1 // pred_region
      %2361 = dma.done [#allocation4], 256
    $region111: #{pallas_forward.1} parent=1 // pred_fallthru
      _
    // Predicated region
    $region112: #{pallas_forward.1} parent=1 // pred_check
      _
    $region113: #{pallas_forward.1} parent=1 // pred_check_branch
      %2363 = sbr.rel (0) target = $region115
    $region114: #{pallas_forward.1} parent=1 // pred_region
      %2364 = dma.done [#allocation8], 32
    $region115: #{pallas_forward.1} parent=1 // pred_fallthru
      _
    %2365 = vsyncpa [#allocation4], 1
    %2366 = vsyncpa [#allocation8], 1
    %2367 = vsyncpa [#allocation5], 1

</llo_original>
